<compile_context>
chip_gen: v6e
topology: v6e:2x2x1
jax: 0.10.0
libtpu: 0.0.40
codegen_flags: <defaults>
</compile_context>

<pallas_src>
import math
import functools

import jax
import jax.numpy as jnp
from jax import lax
from jax.experimental import pallas as pl
from jax.experimental.pallas import tpu as pltpu


def _mhsa_flash_kernel(xq_ref, xkv_ref,
                       wq_ref, bq_ref, wkv_ref, bkv_ref,
                       wo_ref, bo_ref, gamma_ref, beta_ref,
                       o_ref,
                       q_scratch, m_scratch, l_scratch, acc_scratch, ctx_scratch,
                       *, num_heads, head_dim, eps, compute_dtype):
    H, D = num_heads, head_dim
    E = H * D
    ki = pl.program_id(2)
    last_k = pl.num_programs(2) - 1
    scale = 1.0 / math.sqrt(D)

    # ---- per Q-tile init: fused Q projection + online-softmax state reset -------------
    @pl.when(ki == 0)
    def _init():
        xq = xq_ref[0].astype(compute_dtype)                               # (tq, E)
        q = jnp.dot(xq, wq_ref[...], preferred_element_type=jnp.float32)
        q = (q + bq_ref[0]) * scale                                        # (tq, E) f32
        for h in range(H):                                                 # static offsets
            q_scratch[h] = q[:, h * D:(h + 1) * D].astype(compute_dtype)
        m_scratch[...] = jnp.full(m_scratch.shape, -jnp.inf, jnp.float32)
        l_scratch[...] = jnp.zeros(l_scratch.shape, jnp.float32)
        acc_scratch[...] = jnp.zeros(acc_scratch.shape, jnp.float32)

    # ---- per (Q-tile, K-tile) step: fused K|V projection + online softmax update ------
    xkv = xkv_ref[0].astype(compute_dtype)                                 # (tk, E)
    kv = jnp.dot(xkv, wkv_ref[...], preferred_element_type=jnp.float32) + bkv_ref[0]

    for h in range(H):
        k_h = kv[:, h * D:(h + 1) * D].astype(compute_dtype)               # (tk, D)
        v_h = kv[:, E + h * D:E + (h + 1) * D].astype(compute_dtype)       # (tk, D)

        # s = q_h @ k_h^T, contracting on D (no explicit transpose materialized).
        s_h = lax.dot_general(q_scratch[h], k_h, (((1,), (1,)), ((), ())),
                              preferred_element_type=jnp.float32)          # (tq, tk)

        m_prev = m_scratch[h]
        m_new = jnp.maximum(m_prev, jnp.max(s_h, axis=-1, keepdims=True))
        alpha = jnp.exp(m_prev - m_new)
        p = jnp.exp(s_h - m_new)                                           # unnormalized
        l_scratch[h] = alpha * l_scratch[h] + jnp.sum(p, axis=-1, keepdims=True)
        acc_scratch[h] = alpha * acc_scratch[h] + jnp.dot(
            p.astype(compute_dtype), v_h, preferred_element_type=jnp.float32)
        m_scratch[h] = m_new
        # TODO(synk): attention-weight dropout (p=0.1) skipped — eval-mode semantics.

    # ---- finalize: normalize, merge heads, out-projection, residual + LayerNorm -------
    @pl.when(ki == last_k)
    def _finalize():
        for h in range(H):
            # Normalize the (tq, D) accumulator (never the (tq, tk) prob matrix).
            inv_l = 1.0 / l_scratch[h]                                     # (tq, 1) f32
            ctx_scratch[:, h * D:(h + 1) * D] = (
                acc_scratch[h] * inv_l).astype(ctx_scratch.dtype)

        attn = jnp.dot(ctx_scratch[...], wo_ref[...],
                       preferred_element_type=jnp.float32) + bo_ref[0]     # (tq, E) f32
        # TODO(synk): post-attention dropout (p=0.1) skipped — eval-mode semantics.

        y = xq_ref[0].astype(jnp.float32) + attn                           # residual
        mean = jnp.mean(y, axis=-1, keepdims=True)
        var = jnp.mean(jnp.square(y - mean), axis=-1, keepdims=True)
        y = (y - mean) * lax.rsqrt(var + eps)
        o_ref[0] = (y * gamma_ref[0] + beta_ref[0]).astype(o_ref.dtype)


def _choose_tile(s):
    """Largest of (256, 128) that divides s (if tiling helps), else the full extent."""
    for t in (256, 128):
        if s % t == 0 and s // t > 1:
            return t
    return s


def multi_head_self_attention(x, params, *, num_heads, eps=1e-5,
                              compute_dtype=jnp.bfloat16):
    """x: (B, S, E) float32. Returns (B, S, E). compute_dtype: MXU operand dtype."""
    B, S, E = x.shape
    assert E % num_heads == 0
    D = E // num_heads
    cd = compute_dtype

    # PyTorch Linear computes x @ W.T + b; pre-transpose once and fuse K|V weights.
    wq_t = params["wq"].T.astype(cd)                                        # (E, E)
    wkv_t = jnp.concatenate([params["wk"].T, params["wv"].T], axis=1).astype(cd)  # (E, 2E)
    wo_t = params["wo"].T.astype(cd)                                        # (E, E)
    bq = params["bq"].reshape(1, E).astype(jnp.float32)
    bkv = jnp.concatenate([params["bk"], params["bv"]]).reshape(1, 2 * E).astype(jnp.float32)
    bo = params["bo"].reshape(1, E).astype(jnp.float32)
    gamma = params["gamma"].reshape(1, E).astype(jnp.float32)
    beta = params["beta"].reshape(1, E).astype(jnp.float32)

    tq = _choose_tile(S)
    tk = _choose_tile(S)
    nq, nk = S // tq, S // tk

    kernel = functools.partial(_mhsa_flash_kernel, num_heads=num_heads,
                               head_dim=D, eps=eps, compute_dtype=cd)

    def const(shape):
        return pl.BlockSpec(shape, lambda b, qi, ki: (0, 0))

    itemsize_cd = jnp.dtype(cd).itemsize
    cost = pl.CostEstimate(
        flops=int(B * (8 * S * E * E + 4 * S * S * E)),
        transcendentals=int(B * num_heads * S * S),
        bytes_accessed=int(3 * B * S * E * x.dtype.itemsize
                           + 4 * E * E * itemsize_cd + 8 * E * 4),
    )

    return pl.pallas_call(
        kernel,
        out_shape=jax.ShapeDtypeStruct((B, S, E), x.dtype),
        grid_spec=pltpu.PrefetchScalarGridSpec(
            num_scalar_prefetch=0,
            grid=(B, nq, nk),
            in_specs=[
                pl.BlockSpec((1, tq, E), lambda b, qi, ki: (b, qi, 0)),   # x: query tile + residual
                pl.BlockSpec((1, tk, E), lambda b, qi, ki: (b, ki, 0)),   # x: key/value tile
                const((E, E)), const((1, E)),                              # Wq^T, bq
                const((E, 2 * E)), const((1, 2 * E)),                      # [Wk^T|Wv^T], [bk|bv]
                const((E, E)), const((1, E)),                              # Wo^T, bo
                const((1, E)), const((1, E)),                              # gamma, beta
            ],
            out_specs=pl.BlockSpec((1, tq, E), lambda b, qi, ki: (b, qi, 0)),
            scratch_shapes=[
                pltpu.VMEM((num_heads, tq, D), cd),            # q, per head
                pltpu.VMEM((num_heads, tq, 1), jnp.float32),   # running max
                pltpu.VMEM((num_heads, tq, 1), jnp.float32),   # running denom
                pltpu.VMEM((num_heads, tq, D), jnp.float32),   # running context accumulator
                pltpu.VMEM((tq, E), cd),                       # merged context for out-proj
            ],
        ),
        compiler_params=pltpu.CompilerParams(
            dimension_semantics=("parallel", "parallel", "arbitrary")),
        cost_estimate=cost,
    )(x, x, wq_t, bq, wkv_t, bkv, wo_t, bo, gamma, beta)


def _reference(x, params, *, num_heads, eps=1e-5):
    """Pure-JAX reference matching torch.nn.MultiheadAttention (eval) + residual + LN."""
    B, S, E = x.shape
    D = E // num_heads
    q = x @ params["wq"].T + params["bq"]
    k = x @ params["wk"].T + params["bk"]
    v = x @ params["wv"].T + params["bv"]

    def split(t):  # (B,S,E) -> (B,H,S,D)
        return t.reshape(B, S, num_heads, D).transpose(0, 2, 1, 3)

    qh, kh, vh = split(q), split(k), split(v)
    s = jnp.einsum("bhqd,bhkd->bhqk", qh * (D ** -0.5), kh)
    p = jax.nn.softmax(s, axis=-1)
    ctx = jnp.einsum("bhqk,bhkd->bhqd", p, vh)
    ctx = ctx.transpose(0, 2, 1, 3).reshape(B, S, E)
    attn_out = ctx @ params["wo"].T + params["bo"]
    y = x + attn_out
    mean = y.mean(-1, keepdims=True)
    var = ((y - mean) ** 2).mean(-1, keepdims=True)
    yn = (y - mean) / jnp.sqrt(var + eps)
    return yn * params["gamma"] + params["beta"]


def _make_params(key, E):
    ks = jax.random.split(key, 8)
    scale = 1.0 / math.sqrt(E)
    u = lambda k, shp: jax.random.uniform(k, shp, jnp.float32, -scale, scale)
    return {
        # nn.MultiheadAttention in_proj_weight is (3E, E); split into q/k/v blocks.
        "wq": u(ks[0], (E, E)), "wk": u(ks[1], (E, E)), "wv": u(ks[2], (E, E)),
        "bq": u(ks[3], (E,)), "bk": u(ks[4], (E,)), "bv": u(ks[5], (E,)),
        "wo": u(ks[6], (E, E)), "bo": u(ks[7], (E,)),
        "gamma": jnp.ones((E,), jnp.float32), "beta": jnp.zeros((E,), jnp.float32),
    }


if __name__ == "__main__":
    key = jax.random.PRNGKey(0)

    # --- primary small config (matches module scale: batch=2, seq=8, embed=32, heads=4)
    B, S, E, H = 2, 8, 32, 4
    kp, kx, kx2 = jax.random.split(key, 3)
    params = _make_params(kp, E)
    x = jax.random.normal(kx, (B, S, E), jnp.float32)
    ref = _reference(x, params, num_heads=H)

    # f32 compute path: exact semantics check.
    out_f32 = jax.block_until_ready(
        multi_head_self_attention(x, params, num_heads=H, compute_dtype=jnp.float32))
    assert out_f32.shape == (B, S, E)
    assert jnp.allclose(out_f32, ref, atol=1e-4, rtol=1e-4), "f32 kernel mismatch"

    # bf16 MXU-operand path (default): relaxed tolerance, f32 accumulation/statistics.
    out_bf16 = jax.block_until_ready(
        multi_head_self_attention(x, params, num_heads=H, compute_dtype=jnp.bfloat16))
    assert jnp.allclose(out_bf16, ref, atol=3e-2, rtol=3e-2), "bf16 kernel mismatch"

    # --- multi-tile config: exercises the (B, S//tq, S//tk) flash grid (tq=tk=128).
    B2, S2, E2, H2 = 2, 256, 128, 4
    params2 = _make_params(jax.random.fold_in(kp, 1), E2)
    x2 = jax.random.normal(kx2, (B2, S2, E2), jnp.float32)
    ref2 = _reference(x2, params2, num_heads=H2)
    out2 = jax.block_until_ready(
        multi_head_self_attention(x2, params2, num_heads=H2, compute_dtype=jnp.float32))
    assert jnp.allclose(out2, ref2, atol=1e-4, rtol=1e-4), "multi-tile kernel mismatch"

    print("KERNEL_OK")
</pallas_src>

<mosaic_0001>
module attributes {stable_mosaic.version = 11 : i64} {
  func.func @_mhsa_flash_kernel(%arg0: i32, %arg1: i32, %arg2: i32, %arg3: memref<1x8x32xf32, #tpu.memory_space<vmem>>, %arg4: memref<1x8x32xf32, #tpu.memory_space<vmem>>, %arg5: memref<32x32xf32, #tpu.memory_space<vmem>>, %arg6: memref<1x32xf32, #tpu.memory_space<vmem>>, %arg7: memref<32x64xf32, #tpu.memory_space<vmem>>, %arg8: memref<1x64xf32, #tpu.memory_space<vmem>>, %arg9: memref<32x32xf32, #tpu.memory_space<vmem>>, %arg10: memref<1x32xf32, #tpu.memory_space<vmem>>, %arg11: memref<1x32xf32, #tpu.memory_space<vmem>>, %arg12: memref<1x32xf32, #tpu.memory_space<vmem>>, %arg13: memref<1x8x32xf32, #tpu.memory_space<vmem>>, %arg14: memref<4x8x8xf32, #tpu.memory_space<vmem>>, %arg15: memref<4x8x1xf32, #tpu.memory_space<vmem>>, %arg16: memref<4x8x1xf32, #tpu.memory_space<vmem>>, %arg17: memref<4x8x8xf32, #tpu.memory_space<vmem>>, %arg18: memref<8x32xf32, #tpu.memory_space<vmem>>) attributes {dimension_semantics = [#tpu.dimension_semantics<parallel>, #tpu.dimension_semantics<parallel>, #tpu.dimension_semantics<arbitrary>], iteration_bounds = array<i64: 2, 1, 1>, scalar_prefetch = 0 : i64, scratch_operands = 5 : i64, tpu.core_type = #tpu.core_type<tc>, window_params = [{transform_indices = @transform_0, window_bounds = array<i64: 1, 8, 32>}, {transform_indices = @transform_1, window_bounds = array<i64: 1, 8, 32>}, {pipeline_mode = #tpu.pipeline_mode<synchronous>, transform_indices = @transform_2, window_bounds = array<i64: 32, 32>}, {pipeline_mode = #tpu.pipeline_mode<synchronous>, transform_indices = @transform_3, window_bounds = array<i64: 1, 32>}, {pipeline_mode = #tpu.pipeline_mode<synchronous>, transform_indices = @transform_4, window_bounds = array<i64: 32, 64>}, {pipeline_mode = #tpu.pipeline_mode<synchronous>, transform_indices = @transform_5, window_bounds = array<i64: 1, 64>}, {pipeline_mode = #tpu.pipeline_mode<synchronous>, transform_indices = @transform_6, window_bounds = array<i64: 32, 32>}, {pipeline_mode = #tpu.pipeline_mode<synchronous>, transform_indices = @transform_7, window_bounds = array<i64: 1, 32>}, {pipeline_mode = #tpu.pipeline_mode<synchronous>, transform_indices = @transform_8, window_bounds = array<i64: 1, 32>}, {pipeline_mode = #tpu.pipeline_mode<synchronous>, transform_indices = @transform_9, window_bounds = array<i64: 1, 32>}, {transform_indices = @transform_10, window_bounds = array<i64: 1, 8, 32>}]} {
    %c0_i32 = arith.constant 0 : i32
    %0 = arith.cmpi eq, %arg2, %c0_i32 : i32
    %1 = arith.extui %0 : i1 to i32
    %c0_i32_0 = arith.constant 0 : i32
    %2 = arith.cmpi ne, %1, %c0_i32_0 : i32
    scf.if %2 {
      %c0_106 = arith.constant 0 : index
      %c0_107 = arith.constant 0 : index
      %c0_108 = arith.constant 0 : index
      %159 = vector.load %arg3[%c0_106, %c0_107, %c0_108] : memref<1x8x32xf32, #tpu.memory_space<vmem>>, vector<1x8x32xf32>
      %160 = vector.shape_cast %159 : vector<1x8x32xf32> to vector<8x32xf32>
      %c0_109 = arith.constant 0 : index
      %c0_110 = arith.constant 0 : index
      %161 = vector.load %arg5[%c0_109, %c0_110] : memref<32x32xf32, #tpu.memory_space<vmem>>, vector<32x32xf32>
      %cst_111 = arith.constant dense<0.000000e+00> : vector<8x32xf32>
      %162 = tpu.matmul %160, %161, %cst_111 {dimension_numbers = #tpu.dot_dimension_numbers<[1], [0], [0], [1], [0, 0, 1, 1], [], []>} : vector<8x32xf32>, vector<32x32xf32>, vector<8x32xf32> -> vector<8x32xf32>
      %c0_112 = arith.constant 0 : index
      %c0_113 = arith.constant 0 : index
      %163 = vector.load %arg6[%c0_112, %c0_113] : memref<1x32xf32, #tpu.memory_space<vmem>>, vector<1x32xf32>
      %164 = vector.shape_cast %163 : vector<1x32xf32> to vector<32xf32>
      %165 = vector.shape_cast %164 : vector<32xf32> to vector<1x32xf32>
      %166 = vector.broadcast %165 : vector<1x32xf32> to vector<8x32xf32>
      %167 = arith.addf %162, %166 : vector<8x32xf32>
      %cst_114 = arith.constant 0.353553385 : f32
      %168 = vector.broadcast %cst_114 : f32 to vector<8x32xf32>
      %169 = arith.mulf %167, %168 : vector<8x32xf32>
      %170 = vector.extract_strided_slice %169 {offsets = [0, 0], sizes = [8, 8], strides = [1, 1]} : vector<8x32xf32> to vector<8x8xf32>
      %c0_115 = arith.constant 0 : index
      %c0_116 = arith.constant 0 : index
      %c0_117 = arith.constant 0 : index
      %171 = vector.load %arg14[%c0_115, %c0_116, %c0_117] : memref<4x8x8xf32, #tpu.memory_space<vmem>>, vector<1x8x8xf32>
      %172 = vector.shape_cast %171 : vector<1x8x8xf32> to vector<8x8xf32>
      %173 = vector.shape_cast %170 : vector<8x8xf32> to vector<1x8x8xf32>
      tpu.vector_store %arg14[%c0_115, %c0_116, %c0_117], %173 {strides = array<i32>} : memref<4x8x8xf32, #tpu.memory_space<vmem>>, vector<1x8x8xf32>,
      %174 = vector.extract_strided_slice %169 {offsets = [0, 8], sizes = [8, 8], strides = [1, 1]} : vector<8x32xf32> to vector<8x8xf32>
      %c1_118 = arith.constant 1 : index
      %c0_119 = arith.constant 0 : index
      %c0_120 = arith.constant 0 : index
      %175 = vector.load %arg14[%c1_118, %c0_119, %c0_120] : memref<4x8x8xf32, #tpu.memory_space<vmem>>, vector<1x8x8xf32>
      %176 = vector.shape_cast %175 : vector<1x8x8xf32> to vector<8x8xf32>
      %177 = vector.shape_cast %174 : vector<8x8xf32> to vector<1x8x8xf32>
      tpu.vector_store %arg14[%c1_118, %c0_119, %c0_120], %177 {strides = array<i32>} : memref<4x8x8xf32, #tpu.memory_space<vmem>>, vector<1x8x8xf32>,
      %178 = vector.extract_strided_slice %169 {offsets = [0, 16], sizes = [8, 8], strides = [1, 1]} : vector<8x32xf32> to vector<8x8xf32>
      %c2_121 = arith.constant 2 : index
      %c0_122 = arith.constant 0 : index
      %c0_123 = arith.constant 0 : index
      %179 = vector.load %arg14[%c2_121, %c0_122, %c0_123] : memref<4x8x8xf32, #tpu.memory_space<vmem>>, vector<1x8x8xf32>
      %180 = vector.shape_cast %179 : vector<1x8x8xf32> to vector<8x8xf32>
      %181 = vector.shape_cast %178 : vector<8x8xf32> to vector<1x8x8xf32>
      tpu.vector_store %arg14[%c2_121, %c0_122, %c0_123], %181 {strides = array<i32>} : memref<4x8x8xf32, #tpu.memory_space<vmem>>, vector<1x8x8xf32>,
      %182 = vector.extract_strided_slice %169 {offsets = [0, 24], sizes = [8, 8], strides = [1, 1]} : vector<8x32xf32> to vector<8x8xf32>
      %c3_124 = arith.constant 3 : index
      %c0_125 = arith.constant 0 : index
      %c0_126 = arith.constant 0 : index
      %183 = vector.load %arg14[%c3_124, %c0_125, %c0_126] : memref<4x8x8xf32, #tpu.memory_space<vmem>>, vector<1x8x8xf32>
      %184 = vector.shape_cast %183 : vector<1x8x8xf32> to vector<8x8xf32>
      %185 = vector.shape_cast %182 : vector<8x8xf32> to vector<1x8x8xf32>
      tpu.vector_store %arg14[%c3_124, %c0_125, %c0_126], %185 {strides = array<i32>} : memref<4x8x8xf32, #tpu.memory_space<vmem>>, vector<1x8x8xf32>,
      %cst_127 = arith.constant 0xFF800000 : f32
      %186 = vector.broadcast %cst_127 : f32 to vector<4x8x1xf32>
      %c0_128 = arith.constant 0 : index
      %c0_129 = arith.constant 0 : index
      %c0_130 = arith.constant 0 : index
      %187 = vector.load %arg15[%c0_128, %c0_129, %c0_130] : memref<4x8x1xf32, #tpu.memory_space<vmem>>, vector<4x8x1xf32>
      tpu.vector_store %arg15[%c0_128, %c0_129, %c0_130], %186 {strides = array<i32>} : memref<4x8x1xf32, #tpu.memory_space<vmem>>, vector<4x8x1xf32>,
      %cst_131 = arith.constant 0.000000e+00 : f32
      %188 = vector.broadcast %cst_131 : f32 to vector<4x8x1xf32>
      %c0_132 = arith.constant 0 : index
      %c0_133 = arith.constant 0 : index
      %c0_134 = arith.constant 0 : index
      %189 = vector.load %arg16[%c0_132, %c0_133, %c0_134] : memref<4x8x1xf32, #tpu.memory_space<vmem>>, vector<4x8x1xf32>
      tpu.vector_store %arg16[%c0_132, %c0_133, %c0_134], %188 {strides = array<i32>} : memref<4x8x1xf32, #tpu.memory_space<vmem>>, vector<4x8x1xf32>,
      %cst_135 = arith.constant 0.000000e+00 : f32
      %190 = vector.broadcast %cst_135 : f32 to vector<4x8x8xf32>
      %c0_136 = arith.constant 0 : index
      %c0_137 = arith.constant 0 : index
      %c0_138 = arith.constant 0 : index
      %191 = vector.load %arg17[%c0_136, %c0_137, %c0_138] : memref<4x8x8xf32, #tpu.memory_space<vmem>>, vector<4x8x8xf32>
      tpu.vector_store %arg17[%c0_136, %c0_137, %c0_138], %190 {strides = array<i32>} : memref<4x8x8xf32, #tpu.memory_space<vmem>>, vector<4x8x8xf32>,
    } else {
    }
    %c0 = arith.constant 0 : index
    %c0_1 = arith.constant 0 : index
    %c0_2 = arith.constant 0 : index
    %3 = vector.load %arg4[%c0, %c0_1, %c0_2] : memref<1x8x32xf32, #tpu.memory_space<vmem>>, vector<1x8x32xf32>
    %4 = vector.shape_cast %3 : vector<1x8x32xf32> to vector<8x32xf32>
    %c0_3 = arith.constant 0 : index
    %c0_4 = arith.constant 0 : index
    %5 = vector.load %arg7[%c0_3, %c0_4] : memref<32x64xf32, #tpu.memory_space<vmem>>, vector<32x64xf32>
    %cst = arith.constant dense<0.000000e+00> : vector<8x64xf32>
    %6 = tpu.matmul %4, %5, %cst {dimension_numbers = #tpu.dot_dimension_numbers<[1], [0], [0], [1], [0, 0, 1, 1], [], []>} : vector<8x32xf32>, vector<32x64xf32>, vector<8x64xf32> -> vector<8x64xf32>
    %c0_5 = arith.constant 0 : index
    %c0_6 = arith.constant 0 : index
    %7 = vector.load %arg8[%c0_5, %c0_6] : memref<1x64xf32, #tpu.memory_space<vmem>>, vector<1x64xf32>
    %8 = vector.shape_cast %7 : vector<1x64xf32> to vector<64xf32>
    %9 = vector.shape_cast %8 : vector<64xf32> to vector<1x64xf32>
    %10 = vector.broadcast %9 : vector<1x64xf32> to vector<8x64xf32>
    %11 = arith.addf %6, %10 : vector<8x64xf32>
    %12 = vector.extract_strided_slice %11 {offsets = [0, 0], sizes = [8, 8], strides = [1, 1]} : vector<8x64xf32> to vector<8x8xf32>
    %13 = vector.extract_strided_slice %11 {offsets = [0, 32], sizes = [8, 8], strides = [1, 1]} : vector<8x64xf32> to vector<8x8xf32>
    %c0_7 = arith.constant 0 : index
    %c0_8 = arith.constant 0 : index
    %c0_9 = arith.constant 0 : index
    %14 = vector.load %arg14[%c0_7, %c0_8, %c0_9] : memref<4x8x8xf32, #tpu.memory_space<vmem>>, vector<1x8x8xf32>
    %15 = vector.shape_cast %14 : vector<1x8x8xf32> to vector<8x8xf32>
    %cst_10 = arith.constant dense<0.000000e+00> : vector<8x8xf32>
    %16 = tpu.matmul %15, %12, %cst_10 {dimension_numbers = #tpu.dot_dimension_numbers<[1], [1], [0], [0], [0, 0, 1, 0], [], []>} : vector<8x8xf32>, vector<8x8xf32>, vector<8x8xf32> -> vector<8x8xf32>
    %c0_11 = arith.constant 0 : index
    %c0_12 = arith.constant 0 : index
    %c0_13 = arith.constant 0 : index
    %17 = vector.load %arg15[%c0_11, %c0_12, %c0_13] : memref<4x8x1xf32, #tpu.memory_space<vmem>>, vector<1x8x1xf32>
    %18 = vector.shape_cast %17 : vector<1x8x1xf32> to vector<8x1xf32>
    %cst_14 = arith.constant dense<0xFF800000> : vector<8xf32>
    %19 = vector.multi_reduction <maximumf>, %16, %cst_14 [1] : vector<8x8xf32> to vector<8xf32>
    %20 = vector.shape_cast %19 : vector<8xf32> to vector<8x1xf32>
    %21 = arith.maximumf %18, %20 : vector<8x1xf32>
    %22 = arith.subf %18, %21 : vector<8x1xf32>
    %23 = math.exp %22 : vector<8x1xf32>
    %24 = vector.broadcast %21 : vector<8x1xf32> to vector<8x8xf32>
    %25 = arith.subf %16, %24 : vector<8x8xf32>
    %26 = math.exp %25 : vector<8x8xf32>
    %c0_15 = arith.constant 0 : index
    %c0_16 = arith.constant 0 : index
    %c0_17 = arith.constant 0 : index
    %27 = vector.load %arg16[%c0_15, %c0_16, %c0_17] : memref<4x8x1xf32, #tpu.memory_space<vmem>>, vector<1x8x1xf32>
    %28 = vector.shape_cast %27 : vector<1x8x1xf32> to vector<8x1xf32>
    %29 = arith.mulf %23, %28 : vector<8x1xf32>
    %cst_18 = arith.constant dense<0.000000e+00> : vector<8xf32>
    %30 = vector.multi_reduction <add>, %26, %cst_18 [1] : vector<8x8xf32> to vector<8xf32>
    %31 = vector.shape_cast %30 : vector<8xf32> to vector<8x1xf32>
    %32 = arith.addf %29, %31 : vector<8x1xf32>
    %c0_19 = arith.constant 0 : index
    %c0_20 = arith.constant 0 : index
    %c0_21 = arith.constant 0 : index
    %33 = vector.load %arg16[%c0_19, %c0_20, %c0_21] : memref<4x8x1xf32, #tpu.memory_space<vmem>>, vector<1x8x1xf32>
    %34 = vector.shape_cast %33 : vector<1x8x1xf32> to vector<8x1xf32>
    %35 = vector.shape_cast %32 : vector<8x1xf32> to vector<1x8x1xf32>
    tpu.vector_store %arg16[%c0_19, %c0_20, %c0_21], %35 {strides = array<i32>} : memref<4x8x1xf32, #tpu.memory_space<vmem>>, vector<1x8x1xf32>,
    %c0_22 = arith.constant 0 : index
    %c0_23 = arith.constant 0 : index
    %c0_24 = arith.constant 0 : index
    %36 = vector.load %arg17[%c0_22, %c0_23, %c0_24] : memref<4x8x8xf32, #tpu.memory_space<vmem>>, vector<1x8x8xf32>
    %37 = vector.shape_cast %36 : vector<1x8x8xf32> to vector<8x8xf32>
    %38 = vector.broadcast %23 : vector<8x1xf32> to vector<8x8xf32>
    %39 = arith.mulf %38, %37 : vector<8x8xf32>
    %cst_25 = arith.constant dense<0.000000e+00> : vector<8x8xf32>
    %40 = tpu.matmul %26, %13, %cst_25 {dimension_numbers = #tpu.dot_dimension_numbers<[1], [0], [0], [1], [0, 0, 1, 1], [], []>} : vector<8x8xf32>, vector<8x8xf32>, vector<8x8xf32> -> vector<8x8xf32>
    %41 = arith.addf %39, %40 : vector<8x8xf32>
    %c0_26 = arith.constant 0 : index
    %c0_27 = arith.constant 0 : index
    %c0_28 = arith.constant 0 : index
    %42 = vector.load %arg17[%c0_26, %c0_27, %c0_28] : memref<4x8x8xf32, #tpu.memory_space<vmem>>, vector<1x8x8xf32>
    %43 = vector.shape_cast %42 : vector<1x8x8xf32> to vector<8x8xf32>
    %44 = vector.shape_cast %41 : vector<8x8xf32> to vector<1x8x8xf32>
    tpu.vector_store %arg17[%c0_26, %c0_27, %c0_28], %44 {strides = array<i32>} : memref<4x8x8xf32, #tpu.memory_space<vmem>>, vector<1x8x8xf32>,
    %c0_29 = arith.constant 0 : index
    %c0_30 = arith.constant 0 : index
    %c0_31 = arith.constant 0 : index
    %45 = vector.load %arg15[%c0_29, %c0_30, %c0_31] : memref<4x8x1xf32, #tpu.memory_space<vmem>>, vector<1x8x1xf32>
    %46 = vector.shape_cast %45 : vector<1x8x1xf32> to vector<8x1xf32>
    %47 = vector.shape_cast %21 : vector<8x1xf32> to vector<1x8x1xf32>
    tpu.vector_store %arg15[%c0_29, %c0_30, %c0_31], %47 {strides = array<i32>} : memref<4x8x1xf32, #tpu.memory_space<vmem>>, vector<1x8x1xf32>,
    %48 = vector.extract_strided_slice %11 {offsets = [0, 8], sizes = [8, 8], strides = [1, 1]} : vector<8x64xf32> to vector<8x8xf32>
    %49 = vector.extract_strided_slice %11 {offsets = [0, 40], sizes = [8, 8], strides = [1, 1]} : vector<8x64xf32> to vector<8x8xf32>
    %c1 = arith.constant 1 : index
    %c0_32 = arith.constant 0 : index
    %c0_33 = arith.constant 0 : index
    %50 = vector.load %arg14[%c1, %c0_32, %c0_33] : memref<4x8x8xf32, #tpu.memory_space<vmem>>, vector<1x8x8xf32>
    %51 = vector.shape_cast %50 : vector<1x8x8xf32> to vector<8x8xf32>
    %cst_34 = arith.constant dense<0.000000e+00> : vector<8x8xf32>
    %52 = tpu.matmul %51, %48, %cst_34 {dimension_numbers = #tpu.dot_dimension_numbers<[1], [1], [0], [0], [0, 0, 1, 0], [], []>} : vector<8x8xf32>, vector<8x8xf32>, vector<8x8xf32> -> vector<8x8xf32>
    %c1_35 = arith.constant 1 : index
    %c0_36 = arith.constant 0 : index
    %c0_37 = arith.constant 0 : index
    %53 = vector.load %arg15[%c1_35, %c0_36, %c0_37] : memref<4x8x1xf32, #tpu.memory_space<vmem>>, vector<1x8x1xf32>
    %54 = vector.shape_cast %53 : vector<1x8x1xf32> to vector<8x1xf32>
    %cst_38 = arith.constant dense<0xFF800000> : vector<8xf32>
    %55 = vector.multi_reduction <maximumf>, %52, %cst_38 [1] : vector<8x8xf32> to vector<8xf32>
    %56 = vector.shape_cast %55 : vector<8xf32> to vector<8x1xf32>
    %57 = arith.maximumf %54, %56 : vector<8x1xf32>
    %58 = arith.subf %54, %57 : vector<8x1xf32>
    %59 = math.exp %58 : vector<8x1xf32>
    %60 = vector.broadcast %57 : vector<8x1xf32> to vector<8x8xf32>
    %61 = arith.subf %52, %60 : vector<8x8xf32>
    %62 = math.exp %61 : vector<8x8xf32>
    %c1_39 = arith.constant 1 : index
    %c0_40 = arith.constant 0 : index
    %c0_41 = arith.constant 0 : index
    %63 = vector.load %arg16[%c1_39, %c0_40, %c0_41] : memref<4x8x1xf32, #tpu.memory_space<vmem>>, vector<1x8x1xf32>
    %64 = vector.shape_cast %63 : vector<1x8x1xf32> to vector<8x1xf32>
    %65 = arith.mulf %59, %64 : vector<8x1xf32>
    %cst_42 = arith.constant dense<0.000000e+00> : vector<8xf32>
    %66 = vector.multi_reduction <add>, %62, %cst_42 [1] : vector<8x8xf32> to vector<8xf32>
    %67 = vector.shape_cast %66 : vector<8xf32> to vector<8x1xf32>
    %68 = arith.addf %65, %67 : vector<8x1xf32>
    %c1_43 = arith.constant 1 : index
    %c0_44 = arith.constant 0 : index
    %c0_45 = arith.constant 0 : index
    %69 = vector.load %arg16[%c1_43, %c0_44, %c0_45] : memref<4x8x1xf32, #tpu.memory_space<vmem>>, vector<1x8x1xf32>
    %70 = vector.shape_cast %69 : vector<1x8x1xf32> to vector<8x1xf32>
    %71 = vector.shape_cast %68 : vector<8x1xf32> to vector<1x8x1xf32>
    tpu.vector_store %arg16[%c1_43, %c0_44, %c0_45], %71 {strides = array<i32>} : memref<4x8x1xf32, #tpu.memory_space<vmem>>, vector<1x8x1xf32>,
    %c1_46 = arith.constant 1 : index
    %c0_47 = arith.constant 0 : index
    %c0_48 = arith.constant 0 : index
    %72 = vector.load %arg17[%c1_46, %c0_47, %c0_48] : memref<4x8x8xf32, #tpu.memory_space<vmem>>, vector<1x8x8xf32>
    %73 = vector.shape_cast %72 : vector<1x8x8xf32> to vector<8x8xf32>
    %74 = vector.broadcast %59 : vector<8x1xf32> to vector<8x8xf32>
    %75 = arith.mulf %74, %73 : vector<8x8xf32>
    %cst_49 = arith.constant dense<0.000000e+00> : vector<8x8xf32>
    %76 = tpu.matmul %62, %49, %cst_49 {dimension_numbers = #tpu.dot_dimension_numbers<[1], [0], [0], [1], [0, 0, 1, 1], [], []>} : vector<8x8xf32>, vector<8x8xf32>, vector<8x8xf32> -> vector<8x8xf32>
    %77 = arith.addf %75, %76 : vector<8x8xf32>
    %c1_50 = arith.constant 1 : index
    %c0_51 = arith.constant 0 : index
    %c0_52 = arith.constant 0 : index
    %78 = vector.load %arg17[%c1_50, %c0_51, %c0_52] : memref<4x8x8xf32, #tpu.memory_space<vmem>>, vector<1x8x8xf32>
    %79 = vector.shape_cast %78 : vector<1x8x8xf32> to vector<8x8xf32>
    %80 = vector.shape_cast %77 : vector<8x8xf32> to vector<1x8x8xf32>
    tpu.vector_store %arg17[%c1_50, %c0_51, %c0_52], %80 {strides = array<i32>} : memref<4x8x8xf32, #tpu.memory_space<vmem>>, vector<1x8x8xf32>,
    %c1_53 = arith.constant 1 : index
    %c0_54 = arith.constant 0 : index
    %c0_55 = arith.constant 0 : index
    %81 = vector.load %arg15[%c1_53, %c0_54, %c0_55] : memref<4x8x1xf32, #tpu.memory_space<vmem>>, vector<1x8x1xf32>
    %82 = vector.shape_cast %81 : vector<1x8x1xf32> to vector<8x1xf32>
    %83 = vector.shape_cast %57 : vector<8x1xf32> to vector<1x8x1xf32>
    tpu.vector_store %arg15[%c1_53, %c0_54, %c0_55], %83 {strides = array<i32>} : memref<4x8x1xf32, #tpu.memory_space<vmem>>, vector<1x8x1xf32>,
    %84 = vector.extract_strided_slice %11 {offsets = [0, 16], sizes = [8, 8], strides = [1, 1]} : vector<8x64xf32> to vector<8x8xf32>
    %85 = vector.extract_strided_slice %11 {offsets = [0, 48], sizes = [8, 8], strides = [1, 1]} : vector<8x64xf32> to vector<8x8xf32>
    %c2 = arith.constant 2 : index
    %c0_56 = arith.constant 0 : index
    %c0_57 = arith.constant 0 : index
    %86 = vector.load %arg14[%c2, %c0_56, %c0_57] : memref<4x8x8xf32, #tpu.memory_space<vmem>>, vector<1x8x8xf32>
    %87 = vector.shape_cast %86 : vector<1x8x8xf32> to vector<8x8xf32>
    %cst_58 = arith.constant dense<0.000000e+00> : vector<8x8xf32>
    %88 = tpu.matmul %87, %84, %cst_58 {dimension_numbers = #tpu.dot_dimension_numbers<[1], [1], [0], [0], [0, 0, 1, 0], [], []>} : vector<8x8xf32>, vector<8x8xf32>, vector<8x8xf32> -> vector<8x8xf32>
    %c2_59 = arith.constant 2 : index
    %c0_60 = arith.constant 0 : index
    %c0_61 = arith.constant 0 : index
    %89 = vector.load %arg15[%c2_59, %c0_60, %c0_61] : memref<4x8x1xf32, #tpu.memory_space<vmem>>, vector<1x8x1xf32>
    %90 = vector.shape_cast %89 : vector<1x8x1xf32> to vector<8x1xf32>
    %cst_62 = arith.constant dense<0xFF800000> : vector<8xf32>
    %91 = vector.multi_reduction <maximumf>, %88, %cst_62 [1] : vector<8x8xf32> to vector<8xf32>
    %92 = vector.shape_cast %91 : vector<8xf32> to vector<8x1xf32>
    %93 = arith.maximumf %90, %92 : vector<8x1xf32>
    %94 = arith.subf %90, %93 : vector<8x1xf32>
    %95 = math.exp %94 : vector<8x1xf32>
    %96 = vector.broadcast %93 : vector<8x1xf32> to vector<8x8xf32>
    %97 = arith.subf %88, %96 : vector<8x8xf32>
    %98 = math.exp %97 : vector<8x8xf32>
    %c2_63 = arith.constant 2 : index
    %c0_64 = arith.constant 0 : index
    %c0_65 = arith.constant 0 : index
    %99 = vector.load %arg16[%c2_63, %c0_64, %c0_65] : memref<4x8x1xf32, #tpu.memory_space<vmem>>, vector<1x8x1xf32>
    %100 = vector.shape_cast %99 : vector<1x8x1xf32> to vector<8x1xf32>
    %101 = arith.mulf %95, %100 : vector<8x1xf32>
    %cst_66 = arith.constant dense<0.000000e+00> : vector<8xf32>
    %102 = vector.multi_reduction <add>, %98, %cst_66 [1] : vector<8x8xf32> to vector<8xf32>
    %103 = vector.shape_cast %102 : vector<8xf32> to vector<8x1xf32>
    %104 = arith.addf %101, %103 : vector<8x1xf32>
    %c2_67 = arith.constant 2 : index
    %c0_68 = arith.constant 0 : index
    %c0_69 = arith.constant 0 : index
    %105 = vector.load %arg16[%c2_67, %c0_68, %c0_69] : memref<4x8x1xf32, #tpu.memory_space<vmem>>, vector<1x8x1xf32>
    %106 = vector.shape_cast %105 : vector<1x8x1xf32> to vector<8x1xf32>
    %107 = vector.shape_cast %104 : vector<8x1xf32> to vector<1x8x1xf32>
    tpu.vector_store %arg16[%c2_67, %c0_68, %c0_69], %107 {strides = array<i32>} : memref<4x8x1xf32, #tpu.memory_space<vmem>>, vector<1x8x1xf32>,
    %c2_70 = arith.constant 2 : index
    %c0_71 = arith.constant 0 : index
    %c0_72 = arith.constant 0 : index
    %108 = vector.load %arg17[%c2_70, %c0_71, %c0_72] : memref<4x8x8xf32, #tpu.memory_space<vmem>>, vector<1x8x8xf32>
    %109 = vector.shape_cast %108 : vector<1x8x8xf32> to vector<8x8xf32>
    %110 = vector.broadcast %95 : vector<8x1xf32> to vector<8x8xf32>
    %111 = arith.mulf %110, %109 : vector<8x8xf32>
    %cst_73 = arith.constant dense<0.000000e+00> : vector<8x8xf32>
    %112 = tpu.matmul %98, %85, %cst_73 {dimension_numbers = #tpu.dot_dimension_numbers<[1], [0], [0], [1], [0, 0, 1, 1], [], []>} : vector<8x8xf32>, vector<8x8xf32>, vector<8x8xf32> -> vector<8x8xf32>
    %113 = arith.addf %111, %112 : vector<8x8xf32>
    %c2_74 = arith.constant 2 : index
    %c0_75 = arith.constant 0 : index
    %c0_76 = arith.constant 0 : index
    %114 = vector.load %arg17[%c2_74, %c0_75, %c0_76] : memref<4x8x8xf32, #tpu.memory_space<vmem>>, vector<1x8x8xf32>
    %115 = vector.shape_cast %114 : vector<1x8x8xf32> to vector<8x8xf32>
    %116 = vector.shape_cast %113 : vector<8x8xf32> to vector<1x8x8xf32>
    tpu.vector_store %arg17[%c2_74, %c0_75, %c0_76], %116 {strides = array<i32>} : memref<4x8x8xf32, #tpu.memory_space<vmem>>, vector<1x8x8xf32>,
    %c2_77 = arith.constant 2 : index
    %c0_78 = arith.constant 0 : index
    %c0_79 = arith.constant 0 : index
    %117 = vector.load %arg15[%c2_77, %c0_78, %c0_79] : memref<4x8x1xf32, #tpu.memory_space<vmem>>, vector<1x8x1xf32>
    %118 = vector.shape_cast %117 : vector<1x8x1xf32> to vector<8x1xf32>
    %119 = vector.shape_cast %93 : vector<8x1xf32> to vector<1x8x1xf32>
    tpu.vector_store %arg15[%c2_77, %c0_78, %c0_79], %119 {strides = array<i32>} : memref<4x8x1xf32, #tpu.memory_space<vmem>>, vector<1x8x1xf32>,
    %120 = vector.extract_strided_slice %11 {offsets = [0, 24], sizes = [8, 8], strides = [1, 1]} : vector<8x64xf32> to vector<8x8xf32>
    %121 = vector.extract_strided_slice %11 {offsets = [0, 56], sizes = [8, 8], strides = [1, 1]} : vector<8x64xf32> to vector<8x8xf32>
    %c3 = arith.constant 3 : index
    %c0_80 = arith.constant 0 : index
    %c0_81 = arith.constant 0 : index
    %122 = vector.load %arg14[%c3, %c0_80, %c0_81] : memref<4x8x8xf32, #tpu.memory_space<vmem>>, vector<1x8x8xf32>
    %123 = vector.shape_cast %122 : vector<1x8x8xf32> to vector<8x8xf32>
    %cst_82 = arith.constant dense<0.000000e+00> : vector<8x8xf32>
    %124 = tpu.matmul %123, %120, %cst_82 {dimension_numbers = #tpu.dot_dimension_numbers<[1], [1], [0], [0], [0, 0, 1, 0], [], []>} : vector<8x8xf32>, vector<8x8xf32>, vector<8x8xf32> -> vector<8x8xf32>
    %c3_83 = arith.constant 3 : index
    %c0_84 = arith.constant 0 : index
    %c0_85 = arith.constant 0 : index
    %125 = vector.load %arg15[%c3_83, %c0_84, %c0_85] : memref<4x8x1xf32, #tpu.memory_space<vmem>>, vector<1x8x1xf32>
    %126 = vector.shape_cast %125 : vector<1x8x1xf32> to vector<8x1xf32>
    %cst_86 = arith.constant dense<0xFF800000> : vector<8xf32>
    %127 = vector.multi_reduction <maximumf>, %124, %cst_86 [1] : vector<8x8xf32> to vector<8xf32>
    %128 = vector.shape_cast %127 : vector<8xf32> to vector<8x1xf32>
    %129 = arith.maximumf %126, %128 : vector<8x1xf32>
    %130 = arith.subf %126, %129 : vector<8x1xf32>
    %131 = math.exp %130 : vector<8x1xf32>
    %132 = vector.broadcast %129 : vector<8x1xf32> to vector<8x8xf32>
    %133 = arith.subf %124, %132 : vector<8x8xf32>
    %134 = math.exp %133 : vector<8x8xf32>
    %c3_87 = arith.constant 3 : index
    %c0_88 = arith.constant 0 : index
    %c0_89 = arith.constant 0 : index
    %135 = vector.load %arg16[%c3_87, %c0_88, %c0_89] : memref<4x8x1xf32, #tpu.memory_space<vmem>>, vector<1x8x1xf32>
    %136 = vector.shape_cast %135 : vector<1x8x1xf32> to vector<8x1xf32>
    %137 = arith.mulf %131, %136 : vector<8x1xf32>
    %cst_90 = arith.constant dense<0.000000e+00> : vector<8xf32>
    %138 = vector.multi_reduction <add>, %134, %cst_90 [1] : vector<8x8xf32> to vector<8xf32>
    %139 = vector.shape_cast %138 : vector<8xf32> to vector<8x1xf32>
    %140 = arith.addf %137, %139 : vector<8x1xf32>
    %c3_91 = arith.constant 3 : index
    %c0_92 = arith.constant 0 : index
    %c0_93 = arith.constant 0 : index
    %141 = vector.load %arg16[%c3_91, %c0_92, %c0_93] : memref<4x8x1xf32, #tpu.memory_space<vmem>>, vector<1x8x1xf32>
    %142 = vector.shape_cast %141 : vector<1x8x1xf32> to vector<8x1xf32>
    %143 = vector.shape_cast %140 : vector<8x1xf32> to vector<1x8x1xf32>
    tpu.vector_store %arg16[%c3_91, %c0_92, %c0_93], %143 {strides = array<i32>} : memref<4x8x1xf32, #tpu.memory_space<vmem>>, vector<1x8x1xf32>,
    %c3_94 = arith.constant 3 : index
    %c0_95 = arith.constant 0 : index
    %c0_96 = arith.constant 0 : index
    %144 = vector.load %arg17[%c3_94, %c0_95, %c0_96] : memref<4x8x8xf32, #tpu.memory_space<vmem>>, vector<1x8x8xf32>
    %145 = vector.shape_cast %144 : vector<1x8x8xf32> to vector<8x8xf32>
    %146 = vector.broadcast %131 : vector<8x1xf32> to vector<8x8xf32>
    %147 = arith.mulf %146, %145 : vector<8x8xf32>
    %cst_97 = arith.constant dense<0.000000e+00> : vector<8x8xf32>
    %148 = tpu.matmul %134, %121, %cst_97 {dimension_numbers = #tpu.dot_dimension_numbers<[1], [0], [0], [1], [0, 0, 1, 1], [], []>} : vector<8x8xf32>, vector<8x8xf32>, vector<8x8xf32> -> vector<8x8xf32>
    %149 = arith.addf %147, %148 : vector<8x8xf32>
    %c3_98 = arith.constant 3 : index
    %c0_99 = arith.constant 0 : index
    %c0_100 = arith.constant 0 : index
    %150 = vector.load %arg17[%c3_98, %c0_99, %c0_100] : memref<4x8x8xf32, #tpu.memory_space<vmem>>, vector<1x8x8xf32>
    %151 = vector.shape_cast %150 : vector<1x8x8xf32> to vector<8x8xf32>
    %152 = vector.shape_cast %149 : vector<8x8xf32> to vector<1x8x8xf32>
    tpu.vector_store %arg17[%c3_98, %c0_99, %c0_100], %152 {strides = array<i32>} : memref<4x8x8xf32, #tpu.memory_space<vmem>>, vector<1x8x8xf32>,
    %c3_101 = arith.constant 3 : index
    %c0_102 = arith.constant 0 : index
    %c0_103 = arith.constant 0 : index
    %153 = vector.load %arg15[%c3_101, %c0_102, %c0_103] : memref<4x8x1xf32, #tpu.memory_space<vmem>>, vector<1x8x1xf32>
    %154 = vector.shape_cast %153 : vector<1x8x1xf32> to vector<8x1xf32>
    %155 = vector.shape_cast %129 : vector<8x1xf32> to vector<1x8x1xf32>
    tpu.vector_store %arg15[%c3_101, %c0_102, %c0_103], %155 {strides = array<i32>} : memref<4x8x1xf32, #tpu.memory_space<vmem>>, vector<1x8x1xf32>,
    %c0_i32_104 = arith.constant 0 : i32
    %156 = arith.cmpi eq, %arg2, %c0_i32_104 : i32
    %157 = arith.extui %156 : i1 to i32
    %c0_i32_105 = arith.constant 0 : i32
    %158 = arith.cmpi ne, %157, %c0_i32_105 : i32
    scf.if %158 {
      %c0_106 = arith.constant 0 : index
      %c0_107 = arith.constant 0 : index
      %c0_108 = arith.constant 0 : index
      %159 = vector.load %arg16[%c0_106, %c0_107, %c0_108] : memref<4x8x1xf32, #tpu.memory_space<vmem>>, vector<1x8x1xf32>
      %160 = vector.shape_cast %159 : vector<1x8x1xf32> to vector<8x1xf32>
      %cst_109 = arith.constant 1.000000e+00 : f32
      %161 = vector.broadcast %cst_109 : f32 to vector<8x1xf32>
      %162 = arith.divf %161, %160 : vector<8x1xf32>
      %c0_110 = arith.constant 0 : index
      %c0_111 = arith.constant 0 : index
      %c0_112 = arith.constant 0 : index
      %163 = vector.load %arg17[%c0_110, %c0_111, %c0_112] : memref<4x8x8xf32, #tpu.memory_space<vmem>>, vector<1x8x8xf32>
      %164 = vector.shape_cast %163 : vector<1x8x8xf32> to vector<8x8xf32>
      %165 = vector.broadcast %162 : vector<8x1xf32> to vector<8x8xf32>
      %166 = arith.mulf %164, %165 : vector<8x8xf32>
      %c0_113 = arith.constant 0 : index
      %c0_114 = arith.constant 0 : index
      %167 = vector.load %arg18[%c0_113, %c0_114] : memref<8x32xf32, #tpu.memory_space<vmem>>, vector<8x8xf32>
      tpu.vector_store %arg18[%c0_113, %c0_114], %166 {strides = array<i32>} : memref<8x32xf32, #tpu.memory_space<vmem>>, vector<8x8xf32>,
      %c1_115 = arith.constant 1 : index
      %c0_116 = arith.constant 0 : index
      %c0_117 = arith.constant 0 : index
      %168 = vector.load %arg16[%c1_115, %c0_116, %c0_117] : memref<4x8x1xf32, #tpu.memory_space<vmem>>, vector<1x8x1xf32>
      %169 = vector.shape_cast %168 : vector<1x8x1xf32> to vector<8x1xf32>
      %cst_118 = arith.constant 1.000000e+00 : f32
      %170 = vector.broadcast %cst_118 : f32 to vector<8x1xf32>
      %171 = arith.divf %170, %169 : vector<8x1xf32>
      %c1_119 = arith.constant 1 : index
      %c0_120 = arith.constant 0 : index
      %c0_121 = arith.constant 0 : index
      %172 = vector.load %arg17[%c1_119, %c0_120, %c0_121] : memref<4x8x8xf32, #tpu.memory_space<vmem>>, vector<1x8x8xf32>
      %173 = vector.shape_cast %172 : vector<1x8x8xf32> to vector<8x8xf32>
      %174 = vector.broadcast %171 : vector<8x1xf32> to vector<8x8xf32>
      %175 = arith.mulf %173, %174 : vector<8x8xf32>
      %c0_122 = arith.constant 0 : index
      %c8 = arith.constant 8 : index
      %176 = vector.load %arg18[%c0_122, %c8] : memref<8x32xf32, #tpu.memory_space<vmem>>, vector<8x8xf32>
      tpu.vector_store %arg18[%c0_122, %c8], %175 {strides = array<i32>} : memref<8x32xf32, #tpu.memory_space<vmem>>, vector<8x8xf32>,
      %c2_123 = arith.constant 2 : index
      %c0_124 = arith.constant 0 : index
      %c0_125 = arith.constant 0 : index
      %177 = vector.load %arg16[%c2_123, %c0_124, %c0_125] : memref<4x8x1xf32, #tpu.memory_space<vmem>>, vector<1x8x1xf32>
      %178 = vector.shape_cast %177 : vector<1x8x1xf32> to vector<8x1xf32>
      %cst_126 = arith.constant 1.000000e+00 : f32
      %179 = vector.broadcast %cst_126 : f32 to vector<8x1xf32>
      %180 = arith.divf %179, %178 : vector<8x1xf32>
      %c2_127 = arith.constant 2 : index
      %c0_128 = arith.constant 0 : index
      %c0_129 = arith.constant 0 : index
      %181 = vector.load %arg17[%c2_127, %c0_128, %c0_129] : memref<4x8x8xf32, #tpu.memory_space<vmem>>, vector<1x8x8xf32>
      %182 = vector.shape_cast %181 : vector<1x8x8xf32> to vector<8x8xf32>
      %183 = vector.broadcast %180 : vector<8x1xf32> to vector<8x8xf32>
      %184 = arith.mulf %182, %183 : vector<8x8xf32>
      %c0_130 = arith.constant 0 : index
      %c16 = arith.constant 16 : index
      %185 = vector.load %arg18[%c0_130, %c16] : memref<8x32xf32, #tpu.memory_space<vmem>>, vector<8x8xf32>
      tpu.vector_store %arg18[%c0_130, %c16], %184 {strides = array<i32>} : memref<8x32xf32, #tpu.memory_space<vmem>>, vector<8x8xf32>,
      %c3_131 = arith.constant 3 : index
      %c0_132 = arith.constant 0 : index
      %c0_133 = arith.constant 0 : index
      %186 = vector.load %arg16[%c3_131, %c0_132, %c0_133] : memref<4x8x1xf32, #tpu.memory_space<vmem>>, vector<1x8x1xf32>
      %187 = vector.shape_cast %186 : vector<1x8x1xf32> to vector<8x1xf32>
      %cst_134 = arith.constant 1.000000e+00 : f32
      %188 = vector.broadcast %cst_134 : f32 to vector<8x1xf32>
      %189 = arith.divf %188, %187 : vector<8x1xf32>
      %c3_135 = arith.constant 3 : index
      %c0_136 = arith.constant 0 : index
      %c0_137 = arith.constant 0 : index
      %190 = vector.load %arg17[%c3_135, %c0_136, %c0_137] : memref<4x8x8xf32, #tpu.memory_space<vmem>>, vector<1x8x8xf32>
      %191 = vector.shape_cast %190 : vector<1x8x8xf32> to vector<8x8xf32>
      %192 = vector.broadcast %189 : vector<8x1xf32> to vector<8x8xf32>
      %193 = arith.mulf %191, %192 : vector<8x8xf32>
      %c0_138 = arith.constant 0 : index
      %c24 = arith.constant 24 : index
      %194 = vector.load %arg18[%c0_138, %c24] : memref<8x32xf32, #tpu.memory_space<vmem>>, vector<8x8xf32>
      tpu.vector_store %arg18[%c0_138, %c24], %193 {strides = array<i32>} : memref<8x32xf32, #tpu.memory_space<vmem>>, vector<8x8xf32>,
      %c0_139 = arith.constant 0 : index
      %c0_140 = arith.constant 0 : index
      %195 = vector.load %arg18[%c0_139, %c0_140] : memref<8x32xf32, #tpu.memory_space<vmem>>, vector<8x32xf32>
      %c0_141 = arith.constant 0 : index
      %c0_142 = arith.constant 0 : index
      %196 = vector.load %arg9[%c0_141, %c0_142] : memref<32x32xf32, #tpu.memory_space<vmem>>, vector<32x32xf32>
      %cst_143 = arith.constant dense<0.000000e+00> : vector<8x32xf32>
      %197 = tpu.matmul %195, %196, %cst_143 {dimension_numbers = #tpu.dot_dimension_numbers<[1], [0], [0], [1], [0, 0, 1, 1], [], []>} : vector<8x32xf32>, vector<32x32xf32>, vector<8x32xf32> -> vector<8x32xf32>
      %c0_144 = arith.constant 0 : index
      %c0_145 = arith.constant 0 : index
      %198 = vector.load %arg10[%c0_144, %c0_145] : memref<1x32xf32, #tpu.memory_space<vmem>>, vector<1x32xf32>
      %199 = vector.shape_cast %198 : vector<1x32xf32> to vector<32xf32>
      %200 = vector.shape_cast %199 : vector<32xf32> to vector<1x32xf32>
      %201 = vector.broadcast %200 : vector<1x32xf32> to vector<8x32xf32>
      %202 = arith.addf %197, %201 : vector<8x32xf32>
      %c0_146 = arith.constant 0 : index
      %c0_147 = arith.constant 0 : index
      %c0_148 = arith.constant 0 : index
      %203 = vector.load %arg3[%c0_146, %c0_147, %c0_148] : memref<1x8x32xf32, #tpu.memory_space<vmem>>, vector<1x8x32xf32>
      %204 = vector.shape_cast %203 : vector<1x8x32xf32> to vector<8x32xf32>
      %205 = arith.addf %204, %202 : vector<8x32xf32>
      %cst_149 = arith.constant dense<0.000000e+00> : vector<8xf32>
      %206 = vector.multi_reduction <add>, %205, %cst_149 [1] : vector<8x32xf32> to vector<8xf32>
      %207 = vector.shape_cast %206 : vector<8xf32> to vector<8x1xf32>
      %cst_150 = arith.constant 3.200000e+01 : f32
      %208 = vector.broadcast %cst_150 : f32 to vector<8x1xf32>
      %209 = arith.divf %207, %208 : vector<8x1xf32>
      %210 = vector.broadcast %209 : vector<8x1xf32> to vector<8x32xf32>
      %211 = arith.subf %205, %210 : vector<8x32xf32>
      %212 = arith.mulf %211, %211 : vector<8x32xf32>
      %cst_151 = arith.constant dense<0.000000e+00> : vector<8xf32>
      %213 = vector.multi_reduction <add>, %212, %cst_151 [1] : vector<8x32xf32> to vector<8xf32>
      %214 = vector.shape_cast %213 : vector<8xf32> to vector<8x1xf32>
      %cst_152 = arith.constant 3.200000e+01 : f32
      %215 = vector.broadcast %cst_152 : f32 to vector<8x1xf32>
      %216 = arith.divf %214, %215 : vector<8x1xf32>
      %217 = vector.broadcast %209 : vector<8x1xf32> to vector<8x32xf32>
      %218 = arith.subf %205, %217 : vector<8x32xf32>
      %cst_153 = arith.constant 9.99999974E-6 : f32
      %219 = vector.broadcast %cst_153 : f32 to vector<8x1xf32>
      %220 = arith.addf %216, %219 : vector<8x1xf32>
      %221 = math.rsqrt %220 : vector<8x1xf32>
      %222 = vector.broadcast %221 : vector<8x1xf32> to vector<8x32xf32>
      %223 = arith.mulf %218, %222 : vector<8x32xf32>
      %c0_154 = arith.constant 0 : index
      %c0_155 = arith.constant 0 : index
      %224 = vector.load %arg11[%c0_154, %c0_155] : memref<1x32xf32, #tpu.memory_space<vmem>>, vector<1x32xf32>
      %225 = vector.shape_cast %224 : vector<1x32xf32> to vector<32xf32>
      %226 = vector.shape_cast %225 : vector<32xf32> to vector<1x32xf32>
      %227 = vector.broadcast %226 : vector<1x32xf32> to vector<8x32xf32>
      %228 = arith.mulf %223, %227 : vector<8x32xf32>
      %c0_156 = arith.constant 0 : index
      %c0_157 = arith.constant 0 : index
      %229 = vector.load %arg12[%c0_156, %c0_157] : memref<1x32xf32, #tpu.memory_space<vmem>>, vector<1x32xf32>
      %230 = vector.shape_cast %229 : vector<1x32xf32> to vector<32xf32>
      %231 = vector.shape_cast %230 : vector<32xf32> to vector<1x32xf32>
      %232 = vector.broadcast %231 : vector<1x32xf32> to vector<8x32xf32>
      %233 = arith.addf %228, %232 : vector<8x32xf32>
      %c0_158 = arith.constant 0 : index
      %c0_159 = arith.constant 0 : index
      %c0_160 = arith.constant 0 : index
      %234 = vector.load %arg13[%c0_158, %c0_159, %c0_160] : memref<1x8x32xf32, #tpu.memory_space<vmem>>, vector<1x8x32xf32>
      %235 = vector.shape_cast %234 : vector<1x8x32xf32> to vector<8x32xf32>
      %236 = vector.shape_cast %233 : vector<8x32xf32> to vector<1x8x32xf32>
      tpu.vector_store %arg13[%c0_158, %c0_159, %c0_160], %236 {strides = array<i32>} : memref<1x8x32xf32, #tpu.memory_space<vmem>>, vector<1x8x32xf32>,
    } else {
    }
    return
  }
  func.func @transform_0(%arg0: i32, %arg1: i32, %arg2: i32) -> (i32, i32, i32) {
    %c0_i32 = arith.constant 0 : i32
    %c0_i32_0 = arith.constant 0 : i32
    return %arg0, %arg1, %c0_i32 : i32, i32, i32
  }
  func.func @transform_1(%arg0: i32, %arg1: i32, %arg2: i32) -> (i32, i32, i32) {
    %c0_i32 = arith.constant 0 : i32
    %c0_i32_0 = arith.constant 0 : i32
    return %arg0, %arg2, %c0_i32 : i32, i32, i32
  }
  func.func @transform_2(%arg0: i32, %arg1: i32, %arg2: i32) -> (i32, i32) {
    %c0_i32 = arith.constant 0 : i32
    %c0_i32_0 = arith.constant 0 : i32
    %c0_i32_1 = arith.constant 0 : i32
    return %c0_i32, %c0_i32_0 : i32, i32
  }
  func.func @transform_3(%arg0: i32, %arg1: i32, %arg2: i32) -> (i32, i32) {
    %c0_i32 = arith.constant 0 : i32
    %c0_i32_0 = arith.constant 0 : i32
    %c0_i32_1 = arith.constant 0 : i32
    return %c0_i32, %c0_i32_0 : i32, i32
  }
  func.func @transform_4(%arg0: i32, %arg1: i32, %arg2: i32) -> (i32, i32) {
    %c0_i32 = arith.constant 0 : i32
    %c0_i32_0 = arith.constant 0 : i32
    %c0_i32_1 = arith.constant 0 : i32
    return %c0_i32, %c0_i32_0 : i32, i32
  }
  func.func @transform_5(%arg0: i32, %arg1: i32, %arg2: i32) -> (i32, i32) {
    %c0_i32 = arith.constant 0 : i32
    %c0_i32_0 = arith.constant 0 : i32
    %c0_i32_1 = arith.constant 0 : i32
    return %c0_i32, %c0_i32_0 : i32, i32
  }
  func.func @transform_6(%arg0: i32, %arg1: i32, %arg2: i32) -> (i32, i32) {
    %c0_i32 = arith.constant 0 : i32
    %c0_i32_0 = arith.constant 0 : i32
    %c0_i32_1 = arith.constant 0 : i32
    return %c0_i32, %c0_i32_0 : i32, i32
  }
  func.func @transform_7(%arg0: i32, %arg1: i32, %arg2: i32) -> (i32, i32) {
    %c0_i32 = arith.constant 0 : i32
    %c0_i32_0 = arith.constant 0 : i32
    %c0_i32_1 = arith.constant 0 : i32
    return %c0_i32, %c0_i32_0 : i32, i32
  }
  func.func @transform_8(%arg0: i32, %arg1: i32, %arg2: i32) -> (i32, i32) {
    %c0_i32 = arith.constant 0 : i32
    %c0_i32_0 = arith.constant 0 : i32
    %c0_i32_1 = arith.constant 0 : i32
    return %c0_i32, %c0_i32_0 : i32, i32
  }
  func.func @transform_9(%arg0: i32, %arg1: i32, %arg2: i32) -> (i32, i32) {
    %c0_i32 = arith.constant 0 : i32
    %c0_i32_0 = arith.constant 0 : i32
    %c0_i32_1 = arith.constant 0 : i32
    return %c0_i32, %c0_i32_0 : i32, i32
  }
  func.func @transform_10(%arg0: i32, %arg1: i32, %arg2: i32) -> (i32, i32, i32) {
    %c0_i32 = arith.constant 0 : i32
    %c0_i32_0 = arith.constant 0 : i32
    return %arg0, %arg1, %c0_i32 : i32, i32, i32
  }
}

</mosaic_0001>

<llo_original>
// kernel: tpu_custom_call.1
$region0: #{tpu_custom_call.1}
  #allocation0 [shape = 'u32[]', space=smem, size = 0x4, offset = 0x4, fixed_abs, tag = 'smem constant byte address 0x4 - core index']
  #allocation1 [shape = 'u32[144,128]{1,0:T(1,128)}', space=vmem, size = 0x12000, scoped, tag = 'internal scratch']
  #allocation2 [shape = 'f32[4,8,8]{2,1,0:T(8,128)}', space=vmem, size = 0x4000, scoped, tag = 'scratch operand']
  #allocation3 [shape = 'f32[4,8,1]{2,1,0:T(8,128)}', space=vmem, size = 0x4000, scoped, tag = 'scratch operand']
  #allocation4 [shape = 'f32[4,8,1]{2,1,0:T(8,128)}', space=vmem, size = 0x4000, scoped, tag = 'scratch operand']
  #allocation5 [shape = 'f32[4,8,8]{2,1,0:T(8,128)}', space=vmem, size = 0x4000, scoped, tag = 'scratch operand']
  #allocation6 [shape = 'f32[8,32]{1,0:T(8,128)}', space=vmem, size = 0x1000, scoped, tag = 'scratch operand']
  %s0 = inlined_call_operand.hbm [shape: f32[2,8,32], index: 0, kind: input, shape index: {}]
  %s1 = inlined_call_operand.hbm [shape: f32[2,8,32], index: 1, kind: input, shape index: {}]
  %s2 = inlined_call_operand.hbm [shape: f32[32,32], index: 2, kind: input, shape index: {}]
  %s3 = inlined_call_operand.vmem [shape: f32[1,32], index: 3, kind: input, shape index: {}]
  %s4 = inlined_call_operand.hbm [shape: f32[32,64], index: 4, kind: input, shape index: {}]
  %s5 = inlined_call_operand.vmem [shape: f32[1,64], index: 5, kind: input, shape index: {}]
  %s6 = inlined_call_operand.hbm [shape: f32[32,32], index: 6, kind: input, shape index: {}]
  %s7 = inlined_call_operand.vmem [shape: f32[1,32], index: 7, kind: input, shape index: {}]
  %s8 = inlined_call_operand.vmem [shape: f32[1,32], index: 8, kind: input, shape index: {}]
  %s9 = inlined_call_operand.vmem [shape: f32[1,32], index: 9, kind: input, shape index: {}]
  %s10 = inlined_call_operand.hbm [shape: f32[2,8,32], index: 10, kind: output, shape index: {}]
  %s11 = sld [smem:[#allocation0]]
  $region101: #{tpu_custom_call.1} parent=0
    _
  %s13 = ssub.s32 1, %s11
  %s14 = scalar_select 0, %s13, %s11
  $region1: #{tpu_custom_call.1} parent=0
    #allocation7 [shape = 'u8[8192]{0}', space=vmem, size = 0x2000, scoped, tag = 'input window, operand 0']
    #allocation8 [shape = 's32[2]{0}', space=sflag, size = 0x8, scoped, tag = 'scoped memory for tpu_custom_call.1']
    #allocation9 [shape = 's32[2]{0}', space=sflag, size = 0x8, scoped, tag = 'scoped memory for tpu_custom_call.1']
    #allocation10 [shape = 'u8[8192]{0}', space=vmem, size = 0x2000, scoped, tag = 'input window, operand 1']
    #allocation11 [shape = 's32[2]{0}', space=sflag, size = 0x8, scoped, tag = 'scoped memory for tpu_custom_call.1']
    #allocation12 [shape = 'u8[16384]{0}', space=vmem, size = 0x4000, scoped, tag = 'input window, operand 2, single buffered']
    #allocation13 [shape = 'u8[16384]{0}', space=vmem, size = 0x4000, scoped, tag = 'input window, operand 4, single buffered']
    #allocation14 [shape = 's32[1]{0}', space=sflag, size = 0x4, scoped, tag = 'scoped memory for tpu_custom_call.1']
    #allocation15 [shape = 'u8[16384]{0}', space=vmem, size = 0x4000, scoped, tag = 'input window, operand 6, single buffered']
    #allocation16 [shape = 'u8[8192]{0}', space=vmem, size = 0x2000, scoped, tag = 'output window, operand 0']
    %15 = vsyncpa [#allocation8], 0
    %s16 = scalar_lea.sflag [#allocation8], 1
    %17 = vsyncpa %s16, 0
    %18 = vsyncpa [#allocation11], 0
    %s19 = scalar_lea.sflag [#allocation11], 1
    %20 = vsyncpa %s19, 0
    %21 = vsyncpa [#allocation14], 0
    %22 = vsyncpa [#allocation9], 0
    %s23 = scalar_lea.sflag [#allocation9], 1
    %24 = vsyncpa %s23, 0
    loop: start=0, step=1, limit=4
    $region2: #{tpu_custom_call.1} parent=1 // loop_pre_header
      _
    $region3: #{tpu_custom_call.1} parent=1 // loop_header
      %s26 = sphi 0, %s30
      %p27 = scmp.ge.s32.totalorder %s26, 4
      %s33 = sphi 0, %s52
      %s34 = sphi 0, %s48
      %s35 = sphi 0, %s44
      %s36 = sphi 0, %s33
      %s37 = sphi 0, %s34
      %s38 = sphi 0, %s35
      %s39 = sphi 0, %s36
      %s40 = sphi 0, %s37
      %s41 = sphi 0, %s38
      %s57 = sphi 0, %s59
      %s60 = sphi 0, %s57
      %s61 = sphi 0, %s60
      %s77 = sphi 0, %s61
      %s85 = sphi 0, %s87
      %s88 = sphi 0, %s85
      %s89 = sphi 0, %s88
      %s105 = sphi 0, %s89
      %s109 = sphi 0, %s109
      %s111 = sphi 0, %s109
      %s112 = sphi 0, %s111
      %s126 = sphi 0, %s112
      %s130 = sphi 0, %s130
      %s132 = sphi 0, %s130
      %s133 = sphi 0, %s132
      %s147 = sphi 0, %s133
      %s151 = sphi 0, %s151
      %s153 = sphi 0, %s151
      %s154 = sphi 0, %s153
      %s168 = sphi 0, %s154
      %s172 = sphi 0, %s172
      %s174 = sphi 0, %s172
      %s175 = sphi 0, %s174
      %s189 = sphi 0, %s175
      %s193 = sphi 0, %s193
      %s195 = sphi 0, %s193
      %s196 = sphi 0, %s195
      %s210 = sphi 0, %s196
      %s214 = sphi 0, %s214
      %s216 = sphi 0, %s214
      %s217 = sphi 0, %s216
      %s231 = sphi 0, %s217
      %s235 = sphi 0, %s235
      %s237 = sphi 0, %s235
      %s238 = sphi 0, %s237
      %s252 = sphi 0, %s238
      %s256 = sphi 0, %s256
      %s258 = sphi 0, %s256
      %s259 = sphi 0, %s258
      %s273 = sphi 0, %s259
      %s281 = sphi 0, %s283
      %s284 = sphi 0, %s281
      %s285 = sphi 0, %s284
      %s301 = sphi 0, %s285
    $region4: #{tpu_custom_call.1} parent=1 // loop_header_branch
      %29 = sbr.rel (%p27) target = $region8
    $region5: #{tpu_custom_call.1} parent=1 // loop_body
      %s31 = ssub.s32 %s26, 1
      %s32 = ssub.s32 %s26, 2
      %s42 = sadd.s32 1, %s35
      %p43 = scmp.ge.s32.totalorder %s42, 1
      %s44 = scalar_select %p43, 0, %s42
      %s45 = sadd.s32 1, %s34
      %s46 = scalar_select %p43, %s45, %s34
      %p47 = scmp.ge.s32.totalorder %s46, 1
      %s48 = scalar_select %p47, 0, %s46
      %s49 = sadd.s32 1, %s33
      %s50 = scalar_select %p47, %s49, %s33
      %p51 = scmp.ge.s32.totalorder %s50, 2
      %s52 = scalar_select %p51, 0, %s50
      %s53 = ssub.s32 %s33, %s52
      %s54 = ssub.s32 %s34, %s48
      %s55 = sor.u32 %s53, %s54
      %p56 = scmp.eq.s32.totalorder %s55, 0
      %s58 = sadd.s32 %s57, 1
      %s59 = scalar_select %p56, %s57, %s58
      %p62 = pneg %p56
      %p63 = scmp.eq.s32.totalorder %s26, 1
      %p64 = por %p62, %p63
      %p65 = scmp.ne.s32.totalorder %s57, %s60
      %p66 = scmp.eq.s32.totalorder %s26, 0
      %p67 = por %p65, %p66
      %p68 = scmp.ne.s32.totalorder %s57, %s60
      %p69 = scmp.eq.s32.totalorder %s31, 1
      %p70 = por %p68, %p69
      %p71 = scmp.ne.s32.totalorder %s60, %s61
      %p72 = scmp.eq.s32.totalorder %s31, 0
      %p73 = por %p71, %p72
      %p74 = scmp.ne.s32.totalorder %s60, %s61
      %p75 = scmp.eq.s32.totalorder %s32, 1
      %p76 = por %p74, %p75
      %p78 = scmp.ne.s32.totalorder %s61, %s77
      %p79 = scmp.eq.s32.totalorder %s32, 0
      %p80 = por %p78, %p79
      %s81 = ssub.s32 %s33, %s52
      %s82 = ssub.s32 %s35, %s44
      %s83 = sor.u32 %s81, %s82
      %p84 = scmp.eq.s32.totalorder %s83, 0
      %s86 = sadd.s32 %s85, 1
      %s87 = scalar_select %p84, %s85, %s86
      %p90 = pneg %p84
      %p91 = scmp.eq.s32.totalorder %s26, 1
      %p92 = por %p90, %p91
      %p93 = scmp.ne.s32.totalorder %s85, %s88
      %p94 = scmp.eq.s32.totalorder %s26, 0
      %p95 = por %p93, %p94
      %p96 = scmp.ne.s32.totalorder %s85, %s88
      %p97 = scmp.eq.s32.totalorder %s31, 1
      %p98 = por %p96, %p97
      %p99 = scmp.ne.s32.totalorder %s88, %s89
      %p100 = scmp.eq.s32.totalorder %s31, 0
      %p101 = por %p99, %p100
      %p102 = scmp.ne.s32.totalorder %s88, %s89
      %p103 = scmp.eq.s32.totalorder %s32, 1
      %p104 = por %p102, %p103
      %p106 = scmp.ne.s32.totalorder %s89, %s105
      %p107 = scmp.eq.s32.totalorder %s32, 0
      %p108 = por %p106, %p107
      %s110 = sadd.s32 %s109, 1
      %p113 = scmp.eq.s32.totalorder %s26, 1
      %p114 = scmp.ne.s32.totalorder %s109, %s111
      %p115 = scmp.eq.s32.totalorder %s26, 0
      %p116 = por %p114, %p115
      %p117 = scmp.ne.s32.totalorder %s109, %s111
      %p118 = scmp.eq.s32.totalorder %s31, 1
      %p119 = por %p117, %p118
      %p120 = scmp.ne.s32.totalorder %s111, %s112
      %p121 = scmp.eq.s32.totalorder %s31, 0
      %p122 = por %p120, %p121
      %p123 = scmp.ne.s32.totalorder %s111, %s112
      %p124 = scmp.eq.s32.totalorder %s32, 1
      %p125 = por %p123, %p124
      %p127 = scmp.ne.s32.totalorder %s112, %s126
      %p128 = scmp.eq.s32.totalorder %s32, 0
      %p129 = por %p127, %p128
      %s131 = sadd.s32 %s130, 1
      %p134 = scmp.eq.s32.totalorder %s26, 1
      %p135 = scmp.ne.s32.totalorder %s130, %s132
      %p136 = scmp.eq.s32.totalorder %s26, 0
      %p137 = por %p135, %p136
      %p138 = scmp.ne.s32.totalorder %s130, %s132
      %p139 = scmp.eq.s32.totalorder %s31, 1
      %p140 = por %p138, %p139
      %p141 = scmp.ne.s32.totalorder %s132, %s133
      %p142 = scmp.eq.s32.totalorder %s31, 0
      %p143 = por %p141, %p142
      %p144 = scmp.ne.s32.totalorder %s132, %s133
      %p145 = scmp.eq.s32.totalorder %s32, 1
      %p146 = por %p144, %p145
      %p148 = scmp.ne.s32.totalorder %s133, %s147
      %p149 = scmp.eq.s32.totalorder %s32, 0
      %p150 = por %p148, %p149
      %s152 = sadd.s32 %s151, 1
      %p155 = scmp.eq.s32.totalorder %s26, 1
      %p156 = scmp.ne.s32.totalorder %s151, %s153
      %p157 = scmp.eq.s32.totalorder %s26, 0
      %p158 = por %p156, %p157
      %p159 = scmp.ne.s32.totalorder %s151, %s153
      %p160 = scmp.eq.s32.totalorder %s31, 1
      %p161 = por %p159, %p160
      %p162 = scmp.ne.s32.totalorder %s153, %s154
      %p163 = scmp.eq.s32.totalorder %s31, 0
      %p164 = por %p162, %p163
      %p165 = scmp.ne.s32.totalorder %s153, %s154
      %p166 = scmp.eq.s32.totalorder %s32, 1
      %p167 = por %p165, %p166
      %p169 = scmp.ne.s32.totalorder %s154, %s168
      %p170 = scmp.eq.s32.totalorder %s32, 0
      %p171 = por %p169, %p170
      %s173 = sadd.s32 %s172, 1
      %p176 = scmp.eq.s32.totalorder %s26, 1
      %p177 = scmp.ne.s32.totalorder %s172, %s174
      %p178 = scmp.eq.s32.totalorder %s26, 0
      %p179 = por %p177, %p178
      %p180 = scmp.ne.s32.totalorder %s172, %s174
      %p181 = scmp.eq.s32.totalorder %s31, 1
      %p182 = por %p180, %p181
      %p183 = scmp.ne.s32.totalorder %s174, %s175
      %p184 = scmp.eq.s32.totalorder %s31, 0
      %p185 = por %p183, %p184
      %p186 = scmp.ne.s32.totalorder %s174, %s175
      %p187 = scmp.eq.s32.totalorder %s32, 1
      %p188 = por %p186, %p187
      %p190 = scmp.ne.s32.totalorder %s175, %s189
      %p191 = scmp.eq.s32.totalorder %s32, 0
      %p192 = por %p190, %p191
      %s194 = sadd.s32 %s193, 1
      %p197 = scmp.eq.s32.totalorder %s26, 1
      %p198 = scmp.ne.s32.totalorder %s193, %s195
      %p199 = scmp.eq.s32.totalorder %s26, 0
      %p200 = por %p198, %p199
      %p201 = scmp.ne.s32.totalorder %s193, %s195
      %p202 = scmp.eq.s32.totalorder %s31, 1
      %p203 = por %p201, %p202
      %p204 = scmp.ne.s32.totalorder %s195, %s196
      %p205 = scmp.eq.s32.totalorder %s31, 0
      %p206 = por %p204, %p205
      %p207 = scmp.ne.s32.totalorder %s195, %s196
      %p208 = scmp.eq.s32.totalorder %s32, 1
      %p209 = por %p207, %p208
      %p211 = scmp.ne.s32.totalorder %s196, %s210
      %p212 = scmp.eq.s32.totalorder %s32, 0
      %p213 = por %p211, %p212
      %s215 = sadd.s32 %s214, 1
      %p218 = scmp.eq.s32.totalorder %s26, 1
      %p219 = scmp.ne.s32.totalorder %s214, %s216
      %p220 = scmp.eq.s32.totalorder %s26, 0
      %p221 = por %p219, %p220
      %p222 = scmp.ne.s32.totalorder %s214, %s216
      %p223 = scmp.eq.s32.totalorder %s31, 1
      %p224 = por %p222, %p223
      %p225 = scmp.ne.s32.totalorder %s216, %s217
      %p226 = scmp.eq.s32.totalorder %s31, 0
      %p227 = por %p225, %p226
      %p228 = scmp.ne.s32.totalorder %s216, %s217
      %p229 = scmp.eq.s32.totalorder %s32, 1
      %p230 = por %p228, %p229
      %p232 = scmp.ne.s32.totalorder %s217, %s231
      %p233 = scmp.eq.s32.totalorder %s32, 0
      %p234 = por %p232, %p233
      %s236 = sadd.s32 %s235, 1
      %p239 = scmp.eq.s32.totalorder %s26, 1
      %p240 = scmp.ne.s32.totalorder %s235, %s237
      %p241 = scmp.eq.s32.totalorder %s26, 0
      %p242 = por %p240, %p241
      %p243 = scmp.ne.s32.totalorder %s235, %s237
      %p244 = scmp.eq.s32.totalorder %s31, 1
      %p245 = por %p243, %p244
      %p246 = scmp.ne.s32.totalorder %s237, %s238
      %p247 = scmp.eq.s32.totalorder %s31, 0
      %p248 = por %p246, %p247
      %p249 = scmp.ne.s32.totalorder %s237, %s238
      %p250 = scmp.eq.s32.totalorder %s32, 1
      %p251 = por %p249, %p250
      %p253 = scmp.ne.s32.totalorder %s238, %s252
      %p254 = scmp.eq.s32.totalorder %s32, 0
      %p255 = por %p253, %p254
      %s257 = sadd.s32 %s256, 1
      %p260 = scmp.eq.s32.totalorder %s26, 1
      %p261 = scmp.ne.s32.totalorder %s256, %s258
      %p262 = scmp.eq.s32.totalorder %s26, 0
      %p263 = por %p261, %p262
      %p264 = scmp.ne.s32.totalorder %s256, %s258
      %p265 = scmp.eq.s32.totalorder %s31, 1
      %p266 = por %p264, %p265
      %p267 = scmp.ne.s32.totalorder %s258, %s259
      %p268 = scmp.eq.s32.totalorder %s31, 0
      %p269 = por %p267, %p268
      %p270 = scmp.ne.s32.totalorder %s258, %s259
      %p271 = scmp.eq.s32.totalorder %s32, 1
      %p272 = por %p270, %p271
      %p274 = scmp.ne.s32.totalorder %s259, %s273
      %p275 = scmp.eq.s32.totalorder %s32, 0
      %p276 = por %p274, %p275
      %s277 = ssub.s32 %s33, %s52
      %s278 = ssub.s32 %s34, %s48
      %s279 = sor.u32 %s277, %s278
      %p280 = scmp.eq.s32.totalorder %s279, 0
      %s282 = sadd.s32 %s281, 1
      %s283 = scalar_select %p280, %s281, %s282
      %p286 = pneg %p280
      %p287 = scmp.eq.s32.totalorder %s26, 1
      %p288 = por %p286, %p287
      %p289 = scmp.ne.s32.totalorder %s281, %s284
      %p290 = scmp.eq.s32.totalorder %s26, 0
      %p291 = por %p289, %p290
      %p292 = scmp.ne.s32.totalorder %s281, %s284
      %p293 = scmp.eq.s32.totalorder %s31, 1
      %p294 = por %p292, %p293
      %p295 = scmp.ne.s32.totalorder %s284, %s285
      %p296 = scmp.eq.s32.totalorder %s31, 0
      %p297 = por %p295, %p296
      %p298 = scmp.ne.s32.totalorder %s284, %s285
      %p299 = scmp.eq.s32.totalorder %s32, 1
      %p300 = por %p298, %p299
      %p302 = scmp.ne.s32.totalorder %s285, %s301
      %p303 = scmp.eq.s32.totalorder %s32, 0
      %p304 = por %p302, %p303
      %p305 = scmp.le.s32.totalorder 1, %s26
      %p306 = scmp.lt.s32.totalorder %s26, 3
      %p307 = pnand %p305, %p306
      %p308 = pneg %p307
      // Predicated region
      $region9: #{tpu_custom_call.1} parent=5 // pred_check
        _
      $region10: #{tpu_custom_call.1} parent=5 // pred_check_branch
        %310 = sbr.rel (%p307) target = $region12
      $region11: #{tpu_custom_call.1} parent=5 // pred_region
        %s311 = ssub.s32 %s26, 1
        // Predicated region
        $region13: #{tpu_custom_call.1} parent=11 // pred_check
          %p312 = pneg %p122
        $region14: #{tpu_custom_call.1} parent=11 // pred_check_branch
          %314 = sbr.rel (%p312) target = $region16
        $region15: #{tpu_custom_call.1} parent=11 // pred_region
          %s316 = ssub.s32 512, 512
          %317 = vsyncadd [#allocation11], %s316
          %s318 = sshll.u32 [#allocation12], 4
          %s319 = int_to_ptr.vmem [resolvable:$true] %s318
          %324 = dma.hbm_to_vmem [thread:$0]  %s2, 512, %s319, [#allocation11], 128, 128, 8
        $region16: #{tpu_custom_call.1} parent=11 // pred_fallthru
          _
        // Predicated region
        $region17: #{tpu_custom_call.1} parent=11 // pred_check
          %p325 = pneg %p143
        $region18: #{tpu_custom_call.1} parent=11 // pred_check_branch
          %327 = sbr.rel (%p325) target = $region20
        $region19: #{tpu_custom_call.1} parent=11 // pred_region
          _
        $region20: #{tpu_custom_call.1} parent=11 // pred_fallthru
          _
        // Predicated region
        $region21: #{tpu_custom_call.1} parent=11 // pred_check
          %p328 = pneg %p164
        $region22: #{tpu_custom_call.1} parent=11 // pred_check_branch
          %330 = sbr.rel (%p328) target = $region24
        $region23: #{tpu_custom_call.1} parent=11 // pred_region
          %s332 = ssub.s32 512, 512
          %333 = vsyncadd [#allocation14], %s332
          %s334 = sshll.u32 [#allocation13], 4
          %s335 = int_to_ptr.vmem [resolvable:$true] %s334
          %340 = dma.hbm_to_vmem [thread:$0]  %s4, 512, %s335, [#allocation14], 128, 128, 8
        $region24: #{tpu_custom_call.1} parent=11 // pred_fallthru
          _
        // Predicated region
        $region25: #{tpu_custom_call.1} parent=11 // pred_check
          %p341 = pneg %p185
        $region26: #{tpu_custom_call.1} parent=11 // pred_check_branch
          %343 = sbr.rel (%p341) target = $region28
        $region27: #{tpu_custom_call.1} parent=11 // pred_region
          _
        $region28: #{tpu_custom_call.1} parent=11 // pred_fallthru
          _
        // Predicated region
        $region29: #{tpu_custom_call.1} parent=11 // pred_check
          %p344 = pneg %p206
        $region30: #{tpu_custom_call.1} parent=11 // pred_check_branch
          %346 = sbr.rel (%p344) target = $region32
        $region31: #{tpu_custom_call.1} parent=11 // pred_region
          %s348 = ssub.s32 512, 512
          %349 = vsyncadd [#allocation14], %s348
          %s350 = sshll.u32 [#allocation15], 4
          %s351 = int_to_ptr.vmem [resolvable:$true] %s350
          %356 = dma.hbm_to_vmem [thread:$0]  %s6, 512, %s351, [#allocation14], 128, 128, 8
        $region32: #{tpu_custom_call.1} parent=11 // pred_fallthru
          _
        // Predicated region
        $region33: #{tpu_custom_call.1} parent=11 // pred_check
          %p357 = pneg %p227
        $region34: #{tpu_custom_call.1} parent=11 // pred_check_branch
          %359 = sbr.rel (%p357) target = $region36
        $region35: #{tpu_custom_call.1} parent=11 // pred_region
          _
        $region36: #{tpu_custom_call.1} parent=11 // pred_fallthru
          _
        // Predicated region
        $region37: #{tpu_custom_call.1} parent=11 // pred_check
          %p360 = pneg %p248
        $region38: #{tpu_custom_call.1} parent=11 // pred_check_branch
          %362 = sbr.rel (%p360) target = $region40
        $region39: #{tpu_custom_call.1} parent=11 // pred_region
          _
        $region40: #{tpu_custom_call.1} parent=11 // pred_fallthru
          _
        // Predicated region
        $region41: #{tpu_custom_call.1} parent=11 // pred_check
          %p363 = pneg %p269
        $region42: #{tpu_custom_call.1} parent=11 // pred_check_branch
          %365 = sbr.rel (%p363) target = $region44
        $region43: #{tpu_custom_call.1} parent=11 // pred_region
          _
        $region44: #{tpu_custom_call.1} parent=11 // pred_fallthru
          _
      $region12: #{tpu_custom_call.1} parent=5 // pred_fallthru
        _
      %p366 = scmp.lt.s32.totalorder %s26, 2
      // Predicated region
      $region45: #{tpu_custom_call.1} parent=5 // pred_check
        %p367 = pneg %p366
      $region46: #{tpu_custom_call.1} parent=5 // pred_check_branch
        %369 = sbr.rel (%p367) target = $region48
      $region47: #{tpu_custom_call.1} parent=5 // pred_region
        // Predicated region
        $region49: #{tpu_custom_call.1} parent=47 // pred_check
          %p370 = pneg %p67
        $region50: #{tpu_custom_call.1} parent=47 // pred_check_branch
          %372 = sbr.rel (%p370) target = $region52
        $region51: #{tpu_custom_call.1} parent=47 // pred_region
          %s373 = sand.u32 %s57, 1
          %s374 = scalar_lea.sflag [#allocation8], %s373
          %s375 = sand.u32 %s57, 1
          %s376 = smul.addr %s375, 8
          %s377 = scalar_lea.vmem [#allocation7], %s376
          %s379 = ssub.s32 128, 128
          %380 = vsyncadd %s374, %s379
          %s381 = sadd.s32 %s34, %s33
          %s382 = smul.addr %s381, 128
          %s383 = scalar_lea.hbm %s0, %s382
          %s385 = sshll.u32 %s377, 4
          %s386 = int_to_ptr.vmem [resolvable:$true] %s385
          %388 = dma.hbm_to_vmem [thread:$0]  %s383, 128, %s386, %s374
        $region52: #{tpu_custom_call.1} parent=47 // pred_fallthru
          _
        // Predicated region
        $region53: #{tpu_custom_call.1} parent=47 // pred_check
          %p389 = pneg %p95
        $region54: #{tpu_custom_call.1} parent=47 // pred_check_branch
          %391 = sbr.rel (%p389) target = $region56
        $region55: #{tpu_custom_call.1} parent=47 // pred_region
          %s392 = sand.u32 %s26, 1
          %s393 = scalar_lea.sflag [#allocation11], %s392
          %s394 = sand.u32 %s85, 1
          %s395 = smul.addr %s394, 8
          %s396 = scalar_lea.vmem [#allocation10], %s395
          %s398 = ssub.s32 128, 128
          %399 = vsyncadd %s393, %s398
          %s400 = sadd.s32 %s35, %s33
          %s401 = smul.addr %s400, 128
          %s402 = scalar_lea.hbm %s1, %s401
          %s404 = sshll.u32 %s396, 4
          %s405 = int_to_ptr.vmem [resolvable:$true] %s404
          %407 = dma.hbm_to_vmem [thread:$0]  %s402, 128, %s405, %s393
        $region56: #{tpu_custom_call.1} parent=47 // pred_fallthru
          _
      $region48: #{tpu_custom_call.1} parent=5 // pred_fallthru
        _
      %p408 = scmp.le.s32.totalorder 1, %s26
      %p409 = scmp.lt.s32.totalorder %s26, 3
      %p410 = pnand %p408, %p409
      %p411 = pneg %p410
      // Predicated region
      $region57: #{tpu_custom_call.1} parent=5 // pred_check
        _
      $region58: #{tpu_custom_call.1} parent=5 // pred_check_branch
        %413 = sbr.rel (%p410) target = $region60
      $region59: #{tpu_custom_call.1} parent=5 // pred_region
        %s414 = ssub.s32 %s26, 1
        %s415 = sand.u32 %s60, 1
        %s416 = scalar_lea.sflag [#allocation8], %s415
        %s417 = sand.u32 %s60, 1
        %s418 = smul.addr %s417, 8
        %s419 = scalar_lea.vmem [#allocation7], %s418
        // Predicated region
        $region61: #{tpu_custom_call.1} parent=59 // pred_check
          %p420 = pneg %p73
        $region62: #{tpu_custom_call.1} parent=59 // pred_check_branch
          %422 = sbr.rel (%p420) target = $region64
        $region63: #{tpu_custom_call.1} parent=59 // pred_region
          %423 = dma.done %s416, 128
        $region64: #{tpu_custom_call.1} parent=59 // pred_fallthru
          _
        %s424 = sand.u32 %s31, 1
        %s425 = scalar_lea.sflag [#allocation11], %s424
        %s426 = sand.u32 %s88, 1
        %s427 = smul.addr %s426, 8
        %s428 = scalar_lea.vmem [#allocation10], %s427
        // Predicated region
        $region65: #{tpu_custom_call.1} parent=59 // pred_check
          %p429 = pneg %p101
        $region66: #{tpu_custom_call.1} parent=59 // pred_check_branch
          %431 = sbr.rel (%p429) target = $region68
        $region67: #{tpu_custom_call.1} parent=59 // pred_region
          %432 = dma.done %s425, 128
        $region68: #{tpu_custom_call.1} parent=59 // pred_fallthru
          _
        // Predicated region
        $region69: #{tpu_custom_call.1} parent=59 // pred_check
          %p433 = pneg %p122
        $region70: #{tpu_custom_call.1} parent=59 // pred_check_branch
          %435 = sbr.rel (%p433) target = $region72
        $region71: #{tpu_custom_call.1} parent=59 // pred_region
          %436 = dma.done [#allocation11], 512
        $region72: #{tpu_custom_call.1} parent=59 // pred_fallthru
          _
        // Predicated region
        $region73: #{tpu_custom_call.1} parent=59 // pred_check
          %p437 = pneg %p164
        $region74: #{tpu_custom_call.1} parent=59 // pred_check_branch
          %439 = sbr.rel (%p437) target = $region76
        $region75: #{tpu_custom_call.1} parent=59 // pred_region
          %440 = dma.done [#allocation14], 512
        $region76: #{tpu_custom_call.1} parent=59 // pred_fallthru
          _
        // Predicated region
        $region77: #{tpu_custom_call.1} parent=59 // pred_check
          %p441 = pneg %p206
        $region78: #{tpu_custom_call.1} parent=59 // pred_check_branch
          %443 = sbr.rel (%p441) target = $region80
        $region79: #{tpu_custom_call.1} parent=59 // pred_region
          %444 = dma.done [#allocation14], 512
        $region80: #{tpu_custom_call.1} parent=59 // pred_fallthru
          _
        %s445 = sand.u32 %s60, 1
        %s446 = scalar_lea.sflag [#allocation8], %s445
        %s447 = sand.u32 %s60, 1
        %s448 = smul.addr %s447, 8
        %s449 = scalar_lea.vmem [#allocation7], %s448
        %p450 = pneg %p73
        %p451 = pneg %p70
        %s452 = sand.u32 %s31, 1
        %s453 = scalar_lea.sflag [#allocation11], %s452
        %s454 = sand.u32 %s88, 1
        %s455 = smul.addr %s454, 8
        %s456 = scalar_lea.vmem [#allocation10], %s455
        %p457 = pneg %p101
        %p458 = pneg %p98
        %p459 = pneg %p122
        %p460 = pneg %p119
        %p461 = pneg %p143
        %p462 = pneg %p140
        %p463 = pneg %p164
        %p464 = pneg %p161
        %p465 = pneg %p185
        %p466 = pneg %p182
        %p467 = pneg %p206
        %p468 = pneg %p203
        %p469 = pneg %p227
        %p470 = pneg %p224
        %p471 = pneg %p248
        %p472 = pneg %p245
        %p473 = pneg %p269
        %p474 = pneg %p266
        %p475 = pneg %p297
        %p476 = pneg %p294
        %s477 = sand.u32 %s284, 1
        %s478 = scalar_lea.sflag [#allocation9], %s477
        %s479 = sand.u32 %s284, 1
        %s480 = smul.addr %s479, 8
        %s481 = scalar_lea.vmem [#allocation16], %s480
        %p482 = scmp.eq.s32.totalorder %s38, 0
        // Predicated region
        $region81: #{tpu_custom_call.1} parent=59 // pred_check
          %p483 = pneg %p482
        $region82: #{tpu_custom_call.1} parent=59 // pred_check_branch
          %485 = sbr.rel (%p483) target = $region84
        $region83: #{tpu_custom_call.1} parent=59 // pred_region
          %v486 = vld [vmem:[%s419] sm:$0xff]
          %v487 = vld [vmem:[#allocation12] sm:$0xff]
          %v488 = vld [vmem:[#allocation12 + $0x8] sm:$0xff]
          %v489 = vld [vmem:[#allocation12 + $0x10] sm:$0xff]
          %v490 = vld [vmem:[#allocation12 + $0x18] sm:$0xff]
          %v491 = vld [vmem:[%s3] sm:$0x1]
          %v493 = vlaneseq
          %v494 = vshrl.u32 %v493, 7
          %v495 = vsub.s32 0, %v494
          %v496 = vrot.slane %v491, %v495
          %vm498 = vcmask 261120
          %v500 = vsel %vm498, %v486, 0
          %502 = vmatprep.subr.mxu0 0.0
          %503 = vmatpush1.msra.mxu0 0.0
          %504 = vmatprep.subr.mxu0 0.0
          %505 = vmatpush1.msra.mxu0 0.0
          %506 = vmatprep.subr.mxu0 0.0
          %507 = vmatpush1.msra.mxu0 0.0
          %508 = vmatprep.subr.mxu0 0.0
          %509 = vmatpush1.msra.mxu0 0.0
          %510 = vmatprep.subr.mxu0 0.0
          %511 = vmatpush1.msra.mxu0 0.0
          %512 = vmatprep.subr.mxu0 0.0
          %513 = vmatpush1.msra.mxu0 0.0
          %514 = vmatprep.subr.mxu0 0.0
          %515 = vmatpush1.msra.mxu0 0.0
          %516 = vmatprep.subr.mxu0 0.0
          %517 = vmatpush1.msra.mxu0 0.0
          %518 = vmatprep.subr.mxu0 0.0
          %519 = vmatpush1.msra.mxu0 0.0
          %520 = vmatprep.subr.mxu0 0.0
          %521 = vmatpush1.msra.mxu0 0.0
          %522 = vmatprep.subr.mxu0 0.0
          %523 = vmatpush1.msra.mxu0 0.0
          %524 = vmatprep.subr.mxu0 0.0
          %525 = vmatpush1.msra.mxu0 0.0
          %526 = vmatprep.subr.mxu0 0.0
          %527 = vmatpush1.msra.mxu0 %v490
          %528 = vmatprep.subr.mxu0 0.0
          %529 = vmatpush1.msra.mxu0 %v489
          %530 = vmatprep.subr.mxu0 0.0
          %531 = vmatpush1.msra.mxu0 %v488
          %532 = vmatprep.subr.mxu0 0.0
          %533 = vmatpush1.msra.mxu0 %v487
          %534 = vmatprep.subr.mxu0 0.0
          %535 = vmatpush2.msra.mxu0 0.0
          %536 = vmatprep.subr.mxu0 0.0
          %537 = vmatpush2.msra.mxu0 0.0
          %538 = vmatprep.subr.mxu0 0.0
          %539 = vmatpush2.msra.mxu0 0.0
          %540 = vmatprep.subr.mxu0 0.0
          %541 = vmatpush2.msra.mxu0 0.0
          %542 = vmatprep.subr.mxu0 0.0
          %543 = vmatpush2.msra.mxu0 0.0
          %544 = vmatprep.subr.mxu0 0.0
          %545 = vmatpush2.msra.mxu0 0.0
          %546 = vmatprep.subr.mxu0 0.0
          %547 = vmatpush2.msra.mxu0 0.0
          %548 = vmatprep.subr.mxu0 0.0
          %549 = vmatpush2.msra.mxu0 0.0
          %550 = vmatprep.subr.mxu0 0.0
          %551 = vmatpush2.msra.mxu0 0.0
          %552 = vmatprep.subr.mxu0 0.0
          %553 = vmatpush2.msra.mxu0 0.0
          %554 = vmatprep.subr.mxu0 0.0
          %555 = vmatpush2.msra.mxu0 0.0
          %556 = vmatprep.subr.mxu0 0.0
          %557 = vmatpush2.msra.mxu0 0.0
          %558 = vmatprep.subr.mxu0 0.0
          %559 = vmatpush2.msra.mxu0 0.0
          %560 = vmatprep.subr.mxu0 0.0
          %561 = vmatpush2.msra.mxu0 0.0
          %562 = vmatprep.subr.mxu0 0.0
          %563 = vmatpush2.msra.mxu0 0.0
          %564 = vmatprep.subr.mxu0 0.0
          %565 = vmatpush2.msra.mxu0 0.0
          %566 = vmatprep.mubr.f32.mxu0 0.0
          %567 = vmatmul.mubr.f32.gmra.mxu0 %v500
          %v568 = vpop.f32.mrf.mxu0
          %v569 = vadd.f32 %v496, %v568
          %v570 = vpop.f32.mrf.mxu0
          %571 = vdwg.mxu0
          %v572 = vmul.f32 %v569, 0.35355338
          %vm573 = vcmask 64512
          %574 = vst.msk [vmem:[#allocation2] sm:$0xff] %vm573, %v572
          %576 = vrot.lane.b32.xlu0 %v572, 120
          %v577 = vpop.permute.xlu0 %576
          %s579 = scalar_lea.vmem [#allocation2], 8
          %580 = vst.msk [vmem:[%s579] sm:$0xff] %vm573, %v577
          %581 = vrot.lane.b32.xlu0 %v572, 112
          %v582 = vpop.permute.xlu0 %581
          %s584 = scalar_lea.vmem [#allocation2], 16
          %585 = vst.msk [vmem:[%s584] sm:$0xff] %vm573, %v582
          %586 = vrot.lane.b32.xlu0 %v572, 104
          %v587 = vpop.permute.xlu0 %586
          %s589 = scalar_lea.vmem [#allocation2], 24
          %590 = vst.msk [vmem:[%s589] sm:$0xff] %vm573, %v587
          %vm591 = vcmask 7168
          %592 = vst.msk [vmem:[#allocation3] sm:$0xff] %vm591, -inf
          %593 = vst.msk [vmem:[#allocation3 + $0x8] sm:$0xff] %vm591, -inf
          %594 = vst.msk [vmem:[#allocation3 + $0x10] sm:$0xff] %vm591, -inf
          %595 = vst.msk [vmem:[#allocation3 + $0x18] sm:$0xff] %vm591, -inf
          %596 = vst.msk [vmem:[#allocation4] sm:$0xff] %vm591, 0.0
          %597 = vst.msk [vmem:[#allocation4 + $0x8] sm:$0xff] %vm591, 0.0
          %598 = vst.msk [vmem:[#allocation4 + $0x10] sm:$0xff] %vm591, 0.0
          %599 = vst.msk [vmem:[#allocation4 + $0x18] sm:$0xff] %vm591, 0.0
          %600 = vst.msk [vmem:[#allocation5] sm:$0xff] %vm573, 0.0
          %601 = vst.msk [vmem:[#allocation5 + $0x8] sm:$0xff] %vm573, 0.0
          %602 = vst.msk [vmem:[#allocation5 + $0x10] sm:$0xff] %vm573, 0.0
          %603 = vst.msk [vmem:[#allocation5 + $0x18] sm:$0xff] %vm573, 0.0
        $region84: #{tpu_custom_call.1} parent=59 // pred_fallthru
          _
        %v604 = vld [vmem:[%s428] sm:$0xff]
        %v605 = vld [vmem:[#allocation13] sm:$0xff]
        %v606 = vld [vmem:[#allocation13 + $0x8] sm:$0xff]
        %v607 = vld [vmem:[#allocation13 + $0x10] sm:$0xff]
        %v608 = vld [vmem:[#allocation13 + $0x18] sm:$0xff]
        %v609 = vld [vmem:[%s5] sm:$0x1]
        %v611 = vlaneseq
        %v612 = vshrl.u32 %v611, 7
        %v613 = vsub.s32 0, %v612
        %v614 = vrot.slane %v609, %v613
        %vm616 = vcmask 261120
        %v618 = vsel %vm616, %v604, 0
        %620 = vmatprep.subr.mxu0 0.0
        %621 = vmatpush1.msra.mxu0 0.0
        %622 = vmatprep.subr.mxu0 0.0
        %623 = vmatpush1.msra.mxu0 0.0
        %624 = vmatprep.subr.mxu0 0.0
        %625 = vmatpush1.msra.mxu0 0.0
        %626 = vmatprep.subr.mxu0 0.0
        %627 = vmatpush1.msra.mxu0 0.0
        %628 = vmatprep.subr.mxu0 0.0
        %629 = vmatpush1.msra.mxu0 0.0
        %630 = vmatprep.subr.mxu0 0.0
        %631 = vmatpush1.msra.mxu0 0.0
        %632 = vmatprep.subr.mxu0 0.0
        %633 = vmatpush1.msra.mxu0 0.0
        %634 = vmatprep.subr.mxu0 0.0
        %635 = vmatpush1.msra.mxu0 0.0
        %636 = vmatprep.subr.mxu0 0.0
        %637 = vmatpush1.msra.mxu0 0.0
        %638 = vmatprep.subr.mxu0 0.0
        %639 = vmatpush1.msra.mxu0 0.0
        %640 = vmatprep.subr.mxu0 0.0
        %641 = vmatpush1.msra.mxu0 0.0
        %642 = vmatprep.subr.mxu0 0.0
        %643 = vmatpush1.msra.mxu0 0.0
        %644 = vmatprep.subr.mxu0 0.0
        %645 = vmatpush1.msra.mxu0 %v608
        %646 = vmatprep.subr.mxu0 0.0
        %647 = vmatpush1.msra.mxu0 %v607
        %648 = vmatprep.subr.mxu0 0.0
        %649 = vmatpush1.msra.mxu0 %v606
        %650 = vmatprep.subr.mxu0 0.0
        %651 = vmatpush1.msra.mxu0 %v605
        %652 = vmatprep.subr.mxu0 0.0
        %653 = vmatpush2.msra.mxu0 0.0
        %654 = vmatprep.subr.mxu0 0.0
        %655 = vmatpush2.msra.mxu0 0.0
        %656 = vmatprep.subr.mxu0 0.0
        %657 = vmatpush2.msra.mxu0 0.0
        %658 = vmatprep.subr.mxu0 0.0
        %659 = vmatpush2.msra.mxu0 0.0
        %660 = vmatprep.subr.mxu0 0.0
        %661 = vmatpush2.msra.mxu0 0.0
        %662 = vmatprep.subr.mxu0 0.0
        %663 = vmatpush2.msra.mxu0 0.0
        %664 = vmatprep.subr.mxu0 0.0
        %665 = vmatpush2.msra.mxu0 0.0
        %666 = vmatprep.subr.mxu0 0.0
        %667 = vmatpush2.msra.mxu0 0.0
        %668 = vmatprep.subr.mxu0 0.0
        %669 = vmatpush2.msra.mxu0 0.0
        %670 = vmatprep.subr.mxu0 0.0
        %671 = vmatpush2.msra.mxu0 0.0
        %672 = vmatprep.subr.mxu0 0.0
        %673 = vmatpush2.msra.mxu0 0.0
        %674 = vmatprep.subr.mxu0 0.0
        %675 = vmatpush2.msra.mxu0 0.0
        %676 = vmatprep.subr.mxu0 0.0
        %677 = vmatpush2.msra.mxu0 0.0
        %678 = vmatprep.subr.mxu0 0.0
        %679 = vmatpush2.msra.mxu0 0.0
        %680 = vmatprep.subr.mxu0 0.0
        %681 = vmatpush2.msra.mxu0 0.0
        %682 = vmatprep.subr.mxu0 0.0
        %683 = vmatpush2.msra.mxu0 0.0
        %684 = vmatprep.mubr.f32.mxu0 0.0
        %685 = vmatmul.mubr.f32.gmra.mxu0 %v618
        %v686 = vpop.f32.mrf.mxu0
        %v687 = vadd.f32 %v614, %v686
        %v688 = vpop.f32.mrf.mxu0
        %689 = vdwg.mxu0
        %v690 = vld [vmem:[#allocation2] sm:$0xff]
        %vm691 = vcmask 64512
        %v693 = vsel %vm691, %v690, 0
        %v696 = vsel %vm691, %v687, 0
        %698 = vmatprep.subr.mxu0 0.0
        %699 = vmatpush1.xpose.msra.mxu0 0.0
        %700 = vmatprep.subr.mxu0 0.0
        %701 = vmatpush1.xpose.msra.mxu0 0.0
        %702 = vmatprep.subr.mxu0 0.0
        %703 = vmatpush1.xpose.msra.mxu0 0.0
        %704 = vmatprep.subr.mxu0 0.0
        %705 = vmatpush1.xpose.msra.mxu0 0.0
        %706 = vmatprep.subr.mxu0 0.0
        %707 = vmatpush1.xpose.msra.mxu0 0.0
        %708 = vmatprep.subr.mxu0 0.0
        %709 = vmatpush1.xpose.msra.mxu0 0.0
        %710 = vmatprep.subr.mxu0 0.0
        %711 = vmatpush1.xpose.msra.mxu0 0.0
        %712 = vmatprep.subr.mxu0 0.0
        %713 = vmatpush1.xpose.msra.mxu0 0.0
        %714 = vmatprep.subr.mxu0 0.0
        %715 = vmatpush1.xpose.msra.mxu0 0.0
        %716 = vmatprep.subr.mxu0 0.0
        %717 = vmatpush1.xpose.msra.mxu0 0.0
        %718 = vmatprep.subr.mxu0 0.0
        %719 = vmatpush1.xpose.msra.mxu0 0.0
        %720 = vmatprep.subr.mxu0 0.0
        %721 = vmatpush1.xpose.msra.mxu0 0.0
        %722 = vmatprep.subr.mxu0 0.0
        %723 = vmatpush1.xpose.msra.mxu0 0.0
        %724 = vmatprep.subr.mxu0 0.0
        %725 = vmatpush1.xpose.msra.mxu0 0.0
        %726 = vmatprep.subr.mxu0 0.0
        %727 = vmatpush1.xpose.msra.mxu0 0.0
        %728 = vmatprep.subr.mxu0 0.0
        %729 = vmatpush1.xpose.msra.mxu0 %v696
        %730 = vmatprep.subr.mxu0 0.0
        %731 = vmatpush2.xpose.msra.mxu0 0.0
        %732 = vmatprep.subr.mxu0 0.0
        %733 = vmatpush2.xpose.msra.mxu0 0.0
        %734 = vmatprep.subr.mxu0 0.0
        %735 = vmatpush2.xpose.msra.mxu0 0.0
        %736 = vmatprep.subr.mxu0 0.0
        %737 = vmatpush2.xpose.msra.mxu0 0.0
        %738 = vmatprep.subr.mxu0 0.0
        %739 = vmatpush2.xpose.msra.mxu0 0.0
        %740 = vmatprep.subr.mxu0 0.0
        %741 = vmatpush2.xpose.msra.mxu0 0.0
        %742 = vmatprep.subr.mxu0 0.0
        %743 = vmatpush2.xpose.msra.mxu0 0.0
        %744 = vmatprep.subr.mxu0 0.0
        %745 = vmatpush2.xpose.msra.mxu0 0.0
        %746 = vmatprep.subr.mxu0 0.0
        %747 = vmatpush2.xpose.msra.mxu0 0.0
        %748 = vmatprep.subr.mxu0 0.0
        %749 = vmatpush2.xpose.msra.mxu0 0.0
        %750 = vmatprep.subr.mxu0 0.0
        %751 = vmatpush2.xpose.msra.mxu0 0.0
        %752 = vmatprep.subr.mxu0 0.0
        %753 = vmatpush2.xpose.msra.mxu0 0.0
        %754 = vmatprep.subr.mxu0 0.0
        %755 = vmatpush2.xpose.msra.mxu0 0.0
        %756 = vmatprep.subr.mxu0 0.0
        %757 = vmatpush2.xpose.msra.mxu0 0.0
        %758 = vmatprep.subr.mxu0 0.0
        %759 = vmatpush2.xpose.msra.mxu0 0.0
        %760 = vmatprep.subr.mxu0 0.0
        %761 = vmatpush2.xpose.msra.mxu0 0.0
        %762 = vmatprep.mubr.f32.mxu0 0.0
        %763 = vmatmul.mubr.f32.gmra.mxu0 %v693
        %v764 = vpop.f32.mrf.mxu0
        %v765 = vadd.f32 0.0, %v764
        %v766 = vpop.f32.mrf.mxu0
        %767 = vdwg.mxu0
        %v768 = vld [vmem:[#allocation3] sm:$0xff]
        %v769 = vsel %vm691, %v765, -inf
        %770 = vmax.xlane.f32.xlu0 %v769
        %v771 = vpop.xlane.xlu0 %770
        %v772 = vmax.f32 %v768, %v771
        %v773 = vsub.f32 %v768, %v772
        %v774 = vmul.f32 %v773, 1.442695
        %v775 = vpow.pop %v774
        %777 = vset.pattern.permute.xlu0 0
        %778 = vperm.xlu0 %777, %v772
        %v779 = vpop.permute.xlu0 %778
        %v781 = vsub.f32 %v765, %v779
        %v782 = vmul.f32 %v781, 1.442695
        %v783 = vpow.pop %v782
        %v784 = vld [vmem:[#allocation4] sm:$0xff]
        %v785 = vmul.f32 %v775, %v784
        %v786 = vsel %vm691, %v783, 0.0
        %787 = vadd.xlane.f32.xlu0 %v786
        %v788 = vpop.xlane.xlu0 %787
        %v789 = vadd.f32 %v785, %v788
        %vm790 = vcmask 7168
        %791 = vst.msk [vmem:[#allocation4] sm:$0xff] %vm790, %v789
        %v792 = vld [vmem:[#allocation5] sm:$0xff]
        %794 = vset.pattern.permute.xlu0 0
        %795 = vperm.xlu0 %794, %v775
        %v796 = vpop.permute.xlu0 %795
        %v798 = vmul.f32 %v796, %v792
        %799 = vrot.lane.b32.xlu0 %v687, 96
        %v800 = vpop.permute.xlu0 %799
        %v803 = vsel %vm691, %v783, 0
        %805 = vmatprep.subr.mxu0 0.0
        %806 = vmatpush1.msra.mxu0 0.0
        %807 = vmatprep.subr.mxu0 0.0
        %808 = vmatpush1.msra.mxu0 0.0
        %809 = vmatprep.subr.mxu0 0.0
        %810 = vmatpush1.msra.mxu0 0.0
        %811 = vmatprep.subr.mxu0 0.0
        %812 = vmatpush1.msra.mxu0 0.0
        %813 = vmatprep.subr.mxu0 0.0
        %814 = vmatpush1.msra.mxu0 0.0
        %815 = vmatprep.subr.mxu0 0.0
        %816 = vmatpush1.msra.mxu0 0.0
        %817 = vmatprep.subr.mxu0 0.0
        %818 = vmatpush1.msra.mxu0 0.0
        %819 = vmatprep.subr.mxu0 0.0
        %820 = vmatpush1.msra.mxu0 0.0
        %821 = vmatprep.subr.mxu0 0.0
        %822 = vmatpush1.msra.mxu0 0.0
        %823 = vmatprep.subr.mxu0 0.0
        %824 = vmatpush1.msra.mxu0 0.0
        %825 = vmatprep.subr.mxu0 0.0
        %826 = vmatpush1.msra.mxu0 0.0
        %827 = vmatprep.subr.mxu0 0.0
        %828 = vmatpush1.msra.mxu0 0.0
        %829 = vmatprep.subr.mxu0 0.0
        %830 = vmatpush1.msra.mxu0 0.0
        %831 = vmatprep.subr.mxu0 0.0
        %832 = vmatpush1.msra.mxu0 0.0
        %833 = vmatprep.subr.mxu0 0.0
        %834 = vmatpush1.msra.mxu0 0.0
        %835 = vmatprep.subr.mxu0 0.0
        %836 = vmatpush1.msra.mxu0 %v800
        %837 = vmatprep.subr.mxu0 0.0
        %838 = vmatpush2.msra.mxu0 0.0
        %839 = vmatprep.subr.mxu0 0.0
        %840 = vmatpush2.msra.mxu0 0.0
        %841 = vmatprep.subr.mxu0 0.0
        %842 = vmatpush2.msra.mxu0 0.0
        %843 = vmatprep.subr.mxu0 0.0
        %844 = vmatpush2.msra.mxu0 0.0
        %845 = vmatprep.subr.mxu0 0.0
        %846 = vmatpush2.msra.mxu0 0.0
        %847 = vmatprep.subr.mxu0 0.0
        %848 = vmatpush2.msra.mxu0 0.0
        %849 = vmatprep.subr.mxu0 0.0
        %850 = vmatpush2.msra.mxu0 0.0
        %851 = vmatprep.subr.mxu0 0.0
        %852 = vmatpush2.msra.mxu0 0.0
        %853 = vmatprep.subr.mxu0 0.0
        %854 = vmatpush2.msra.mxu0 0.0
        %855 = vmatprep.subr.mxu0 0.0
        %856 = vmatpush2.msra.mxu0 0.0
        %857 = vmatprep.subr.mxu0 0.0
        %858 = vmatpush2.msra.mxu0 0.0
        %859 = vmatprep.subr.mxu0 0.0
        %860 = vmatpush2.msra.mxu0 0.0
        %861 = vmatprep.subr.mxu0 0.0
        %862 = vmatpush2.msra.mxu0 0.0
        %863 = vmatprep.subr.mxu0 0.0
        %864 = vmatpush2.msra.mxu0 0.0
        %865 = vmatprep.subr.mxu0 0.0
        %866 = vmatpush2.msra.mxu0 0.0
        %867 = vmatprep.subr.mxu0 0.0
        %868 = vmatpush2.msra.mxu0 0.0
        %869 = vmatprep.mubr.f32.mxu0 0.0
        %870 = vmatmul.mubr.f32.gmra.mxu0 %v803
        %v871 = vpop.f32.mrf.mxu0
        %v872 = vadd.f32 0.0, %v871
        %v873 = vpop.f32.mrf.mxu0
        %874 = vdwg.mxu0
        %v875 = vadd.f32 %v798, %v872
        %876 = vst.msk [vmem:[#allocation5] sm:$0xff] %vm691, %v875
        %877 = vst.msk [vmem:[#allocation3] sm:$0xff] %vm790, %v772
        %s878 = scalar_lea.vmem [#allocation2], 8
        %v879 = vld [vmem:[%s878] sm:$0xff]
        %880 = vrot.lane.b32.xlu0 %v687, 120
        %v881 = vpop.permute.xlu0 %880
        %v883 = vsel %vm691, %v879, 0
        %v885 = vsel %vm691, %v881, 0
        %887 = vmatprep.subr.mxu0 0.0
        %888 = vmatpush1.xpose.msra.mxu0 0.0
        %889 = vmatprep.subr.mxu0 0.0
        %890 = vmatpush1.xpose.msra.mxu0 0.0
        %891 = vmatprep.subr.mxu0 0.0
        %892 = vmatpush1.xpose.msra.mxu0 0.0
        %893 = vmatprep.subr.mxu0 0.0
        %894 = vmatpush1.xpose.msra.mxu0 0.0
        %895 = vmatprep.subr.mxu0 0.0
        %896 = vmatpush1.xpose.msra.mxu0 0.0
        %897 = vmatprep.subr.mxu0 0.0
        %898 = vmatpush1.xpose.msra.mxu0 0.0
        %899 = vmatprep.subr.mxu0 0.0
        %900 = vmatpush1.xpose.msra.mxu0 0.0
        %901 = vmatprep.subr.mxu0 0.0
        %902 = vmatpush1.xpose.msra.mxu0 0.0
        %903 = vmatprep.subr.mxu0 0.0
        %904 = vmatpush1.xpose.msra.mxu0 0.0
        %905 = vmatprep.subr.mxu0 0.0
        %906 = vmatpush1.xpose.msra.mxu0 0.0
        %907 = vmatprep.subr.mxu0 0.0
        %908 = vmatpush1.xpose.msra.mxu0 0.0
        %909 = vmatprep.subr.mxu0 0.0
        %910 = vmatpush1.xpose.msra.mxu0 0.0
        %911 = vmatprep.subr.mxu0 0.0
        %912 = vmatpush1.xpose.msra.mxu0 0.0
        %913 = vmatprep.subr.mxu0 0.0
        %914 = vmatpush1.xpose.msra.mxu0 0.0
        %915 = vmatprep.subr.mxu0 0.0
        %916 = vmatpush1.xpose.msra.mxu0 0.0
        %917 = vmatprep.subr.mxu0 0.0
        %918 = vmatpush1.xpose.msra.mxu0 %v885
        %919 = vmatprep.subr.mxu0 0.0
        %920 = vmatpush2.xpose.msra.mxu0 0.0
        %921 = vmatprep.subr.mxu0 0.0
        %922 = vmatpush2.xpose.msra.mxu0 0.0
        %923 = vmatprep.subr.mxu0 0.0
        %924 = vmatpush2.xpose.msra.mxu0 0.0
        %925 = vmatprep.subr.mxu0 0.0
        %926 = vmatpush2.xpose.msra.mxu0 0.0
        %927 = vmatprep.subr.mxu0 0.0
        %928 = vmatpush2.xpose.msra.mxu0 0.0
        %929 = vmatprep.subr.mxu0 0.0
        %930 = vmatpush2.xpose.msra.mxu0 0.0
        %931 = vmatprep.subr.mxu0 0.0
        %932 = vmatpush2.xpose.msra.mxu0 0.0
        %933 = vmatprep.subr.mxu0 0.0
        %934 = vmatpush2.xpose.msra.mxu0 0.0
        %935 = vmatprep.subr.mxu0 0.0
        %936 = vmatpush2.xpose.msra.mxu0 0.0
        %937 = vmatprep.subr.mxu0 0.0
        %938 = vmatpush2.xpose.msra.mxu0 0.0
        %939 = vmatprep.subr.mxu0 0.0
        %940 = vmatpush2.xpose.msra.mxu0 0.0
        %941 = vmatprep.subr.mxu0 0.0
        %942 = vmatpush2.xpose.msra.mxu0 0.0
        %943 = vmatprep.subr.mxu0 0.0
        %944 = vmatpush2.xpose.msra.mxu0 0.0
        %945 = vmatprep.subr.mxu0 0.0
        %946 = vmatpush2.xpose.msra.mxu0 0.0
        %947 = vmatprep.subr.mxu0 0.0
        %948 = vmatpush2.xpose.msra.mxu0 0.0
        %949 = vmatprep.subr.mxu0 0.0
        %950 = vmatpush2.xpose.msra.mxu0 0.0
        %951 = vmatprep.mubr.f32.mxu0 0.0
        %952 = vmatmul.mubr.f32.gmra.mxu0 %v883
        %v953 = vpop.f32.mrf.mxu0
        %v954 = vadd.f32 0.0, %v953
        %v955 = vpop.f32.mrf.mxu0
        %956 = vdwg.mxu0
        %s957 = scalar_lea.vmem [#allocation3], 8
        %v958 = vld [vmem:[%s957] sm:$0xff]
        %v959 = vsel %vm691, %v954, -inf
        %960 = vmax.xlane.f32.xlu0 %v959
        %v961 = vpop.xlane.xlu0 %960
        %v962 = vmax.f32 %v958, %v961
        %v963 = vsub.f32 %v958, %v962
        %v964 = vmul.f32 %v963, 1.442695
        %v965 = vpow.pop %v964
        %967 = vset.pattern.permute.xlu0 0
        %968 = vperm.xlu0 %967, %v962
        %v969 = vpop.permute.xlu0 %968
        %v971 = vsub.f32 %v954, %v969
        %v972 = vmul.f32 %v971, 1.442695
        %v973 = vpow.pop %v972
        %s974 = scalar_lea.vmem [#allocation4], 8
        %v975 = vld [vmem:[%s974] sm:$0xff]
        %v976 = vmul.f32 %v965, %v975
        %v977 = vsel %vm691, %v973, 0.0
        %978 = vadd.xlane.f32.xlu0 %v977
        %v979 = vpop.xlane.xlu0 %978
        %v980 = vadd.f32 %v976, %v979
        %981 = vst.msk [vmem:[%s974] sm:$0xff] %vm790, %v980
        %s982 = scalar_lea.vmem [#allocation5], 8
        %v983 = vld [vmem:[%s982] sm:$0xff]
        %985 = vset.pattern.permute.xlu0 0
        %986 = vperm.xlu0 %985, %v965
        %v987 = vpop.permute.xlu0 %986
        %v989 = vmul.f32 %v987, %v983
        %990 = vrot.lane.b32.xlu0 %v687, 88
        %v991 = vpop.permute.xlu0 %990
        %v994 = vsel %vm691, %v973, 0
        %996 = vmatprep.subr.mxu0 0.0
        %997 = vmatpush1.msra.mxu0 0.0
        %998 = vmatprep.subr.mxu0 0.0
        %999 = vmatpush1.msra.mxu0 0.0
        %1000 = vmatprep.subr.mxu0 0.0
        %1001 = vmatpush1.msra.mxu0 0.0
        %1002 = vmatprep.subr.mxu0 0.0
        %1003 = vmatpush1.msra.mxu0 0.0
        %1004 = vmatprep.subr.mxu0 0.0
        %1005 = vmatpush1.msra.mxu0 0.0
        %1006 = vmatprep.subr.mxu0 0.0
        %1007 = vmatpush1.msra.mxu0 0.0
        %1008 = vmatprep.subr.mxu0 0.0
        %1009 = vmatpush1.msra.mxu0 0.0
        %1010 = vmatprep.subr.mxu0 0.0
        %1011 = vmatpush1.msra.mxu0 0.0
        %1012 = vmatprep.subr.mxu0 0.0
        %1013 = vmatpush1.msra.mxu0 0.0
        %1014 = vmatprep.subr.mxu0 0.0
        %1015 = vmatpush1.msra.mxu0 0.0
        %1016 = vmatprep.subr.mxu0 0.0
        %1017 = vmatpush1.msra.mxu0 0.0
        %1018 = vmatprep.subr.mxu0 0.0
        %1019 = vmatpush1.msra.mxu0 0.0
        %1020 = vmatprep.subr.mxu0 0.0
        %1021 = vmatpush1.msra.mxu0 0.0
        %1022 = vmatprep.subr.mxu0 0.0
        %1023 = vmatpush1.msra.mxu0 0.0
        %1024 = vmatprep.subr.mxu0 0.0
        %1025 = vmatpush1.msra.mxu0 0.0
        %1026 = vmatprep.subr.mxu0 0.0
        %1027 = vmatpush1.msra.mxu0 %v991
        %1028 = vmatprep.subr.mxu0 0.0
        %1029 = vmatpush2.msra.mxu0 0.0
        %1030 = vmatprep.subr.mxu0 0.0
        %1031 = vmatpush2.msra.mxu0 0.0
        %1032 = vmatprep.subr.mxu0 0.0
        %1033 = vmatpush2.msra.mxu0 0.0
        %1034 = vmatprep.subr.mxu0 0.0
        %1035 = vmatpush2.msra.mxu0 0.0
        %1036 = vmatprep.subr.mxu0 0.0
        %1037 = vmatpush2.msra.mxu0 0.0
        %1038 = vmatprep.subr.mxu0 0.0
        %1039 = vmatpush2.msra.mxu0 0.0
        %1040 = vmatprep.subr.mxu0 0.0
        %1041 = vmatpush2.msra.mxu0 0.0
        %1042 = vmatprep.subr.mxu0 0.0
        %1043 = vmatpush2.msra.mxu0 0.0
        %1044 = vmatprep.subr.mxu0 0.0
        %1045 = vmatpush2.msra.mxu0 0.0
        %1046 = vmatprep.subr.mxu0 0.0
        %1047 = vmatpush2.msra.mxu0 0.0
        %1048 = vmatprep.subr.mxu0 0.0
        %1049 = vmatpush2.msra.mxu0 0.0
        %1050 = vmatprep.subr.mxu0 0.0
        %1051 = vmatpush2.msra.mxu0 0.0
        %1052 = vmatprep.subr.mxu0 0.0
        %1053 = vmatpush2.msra.mxu0 0.0
        %1054 = vmatprep.subr.mxu0 0.0
        %1055 = vmatpush2.msra.mxu0 0.0
        %1056 = vmatprep.subr.mxu0 0.0
        %1057 = vmatpush2.msra.mxu0 0.0
        %1058 = vmatprep.subr.mxu0 0.0
        %1059 = vmatpush2.msra.mxu0 0.0
        %1060 = vmatprep.mubr.f32.mxu0 0.0
        %1061 = vmatmul.mubr.f32.gmra.mxu0 %v994
        %v1062 = vpop.f32.mrf.mxu0
        %v1063 = vadd.f32 0.0, %v1062
        %v1064 = vpop.f32.mrf.mxu0
        %1065 = vdwg.mxu0
        %v1066 = vadd.f32 %v989, %v1063
        %1067 = vst.msk [vmem:[%s982] sm:$0xff] %vm691, %v1066
        %1068 = vst.msk [vmem:[%s957] sm:$0xff] %vm790, %v962
        %s1069 = scalar_lea.vmem [#allocation2], 16
        %v1070 = vld [vmem:[%s1069] sm:$0xff]
        %1071 = vrot.lane.b32.xlu0 %v687, 112
        %v1072 = vpop.permute.xlu0 %1071
        %v1074 = vsel %vm691, %v1070, 0
        %v1076 = vsel %vm691, %v1072, 0
        %1078 = vmatprep.subr.mxu0 0.0
        %1079 = vmatpush1.xpose.msra.mxu0 0.0
        %1080 = vmatprep.subr.mxu0 0.0
        %1081 = vmatpush1.xpose.msra.mxu0 0.0
        %1082 = vmatprep.subr.mxu0 0.0
        %1083 = vmatpush1.xpose.msra.mxu0 0.0
        %1084 = vmatprep.subr.mxu0 0.0
        %1085 = vmatpush1.xpose.msra.mxu0 0.0
        %1086 = vmatprep.subr.mxu0 0.0
        %1087 = vmatpush1.xpose.msra.mxu0 0.0
        %1088 = vmatprep.subr.mxu0 0.0
        %1089 = vmatpush1.xpose.msra.mxu0 0.0
        %1090 = vmatprep.subr.mxu0 0.0
        %1091 = vmatpush1.xpose.msra.mxu0 0.0
        %1092 = vmatprep.subr.mxu0 0.0
        %1093 = vmatpush1.xpose.msra.mxu0 0.0
        %1094 = vmatprep.subr.mxu0 0.0
        %1095 = vmatpush1.xpose.msra.mxu0 0.0
        %1096 = vmatprep.subr.mxu0 0.0
        %1097 = vmatpush1.xpose.msra.mxu0 0.0
        %1098 = vmatprep.subr.mxu0 0.0
        %1099 = vmatpush1.xpose.msra.mxu0 0.0
        %1100 = vmatprep.subr.mxu0 0.0
        %1101 = vmatpush1.xpose.msra.mxu0 0.0
        %1102 = vmatprep.subr.mxu0 0.0
        %1103 = vmatpush1.xpose.msra.mxu0 0.0
        %1104 = vmatprep.subr.mxu0 0.0
        %1105 = vmatpush1.xpose.msra.mxu0 0.0
        %1106 = vmatprep.subr.mxu0 0.0
        %1107 = vmatpush1.xpose.msra.mxu0 0.0
        %1108 = vmatprep.subr.mxu0 0.0
        %1109 = vmatpush1.xpose.msra.mxu0 %v1076
        %1110 = vmatprep.subr.mxu0 0.0
        %1111 = vmatpush2.xpose.msra.mxu0 0.0
        %1112 = vmatprep.subr.mxu0 0.0
        %1113 = vmatpush2.xpose.msra.mxu0 0.0
        %1114 = vmatprep.subr.mxu0 0.0
        %1115 = vmatpush2.xpose.msra.mxu0 0.0
        %1116 = vmatprep.subr.mxu0 0.0
        %1117 = vmatpush2.xpose.msra.mxu0 0.0
        %1118 = vmatprep.subr.mxu0 0.0
        %1119 = vmatpush2.xpose.msra.mxu0 0.0
        %1120 = vmatprep.subr.mxu0 0.0
        %1121 = vmatpush2.xpose.msra.mxu0 0.0
        %1122 = vmatprep.subr.mxu0 0.0
        %1123 = vmatpush2.xpose.msra.mxu0 0.0
        %1124 = vmatprep.subr.mxu0 0.0
        %1125 = vmatpush2.xpose.msra.mxu0 0.0
        %1126 = vmatprep.subr.mxu0 0.0
        %1127 = vmatpush2.xpose.msra.mxu0 0.0
        %1128 = vmatprep.subr.mxu0 0.0
        %1129 = vmatpush2.xpose.msra.mxu0 0.0
        %1130 = vmatprep.subr.mxu0 0.0
        %1131 = vmatpush2.xpose.msra.mxu0 0.0
        %1132 = vmatprep.subr.mxu0 0.0
        %1133 = vmatpush2.xpose.msra.mxu0 0.0
        %1134 = vmatprep.subr.mxu0 0.0
        %1135 = vmatpush2.xpose.msra.mxu0 0.0
        %1136 = vmatprep.subr.mxu0 0.0
        %1137 = vmatpush2.xpose.msra.mxu0 0.0
        %1138 = vmatprep.subr.mxu0 0.0
        %1139 = vmatpush2.xpose.msra.mxu0 0.0
        %1140 = vmatprep.subr.mxu0 0.0
        %1141 = vmatpush2.xpose.msra.mxu0 0.0
        %1142 = vmatprep.mubr.f32.mxu0 0.0
        %1143 = vmatmul.mubr.f32.gmra.mxu0 %v1074
        %v1144 = vpop.f32.mrf.mxu0
        %v1145 = vadd.f32 0.0, %v1144
        %v1146 = vpop.f32.mrf.mxu0
        %1147 = vdwg.mxu0
        %s1148 = scalar_lea.vmem [#allocation3], 16
        %v1149 = vld [vmem:[%s1148] sm:$0xff]
        %v1150 = vsel %vm691, %v1145, -inf
        %1151 = vmax.xlane.f32.xlu0 %v1150
        %v1152 = vpop.xlane.xlu0 %1151
        %v1153 = vmax.f32 %v1149, %v1152
        %v1154 = vsub.f32 %v1149, %v1153
        %v1155 = vmul.f32 %v1154, 1.442695
        %v1156 = vpow.pop %v1155
        %1158 = vset.pattern.permute.xlu0 0
        %1159 = vperm.xlu0 %1158, %v1153
        %v1160 = vpop.permute.xlu0 %1159
        %v1162 = vsub.f32 %v1145, %v1160
        %v1163 = vmul.f32 %v1162, 1.442695
        %v1164 = vpow.pop %v1163
        %s1165 = scalar_lea.vmem [#allocation4], 16
        %v1166 = vld [vmem:[%s1165] sm:$0xff]
        %v1167 = vmul.f32 %v1156, %v1166
        %v1168 = vsel %vm691, %v1164, 0.0
        %1169 = vadd.xlane.f32.xlu0 %v1168
        %v1170 = vpop.xlane.xlu0 %1169
        %v1171 = vadd.f32 %v1167, %v1170
        %1172 = vst.msk [vmem:[%s1165] sm:$0xff] %vm790, %v1171
        %s1173 = scalar_lea.vmem [#allocation5], 16
        %v1174 = vld [vmem:[%s1173] sm:$0xff]
        %1176 = vset.pattern.permute.xlu0 0
        %1177 = vperm.xlu0 %1176, %v1156
        %v1178 = vpop.permute.xlu0 %1177
        %v1180 = vmul.f32 %v1178, %v1174
        %1181 = vrot.lane.b32.xlu0 %v687, 80
        %v1182 = vpop.permute.xlu0 %1181
        %v1185 = vsel %vm691, %v1164, 0
        %1187 = vmatprep.subr.mxu0 0.0
        %1188 = vmatpush1.msra.mxu0 0.0
        %1189 = vmatprep.subr.mxu0 0.0
        %1190 = vmatpush1.msra.mxu0 0.0
        %1191 = vmatprep.subr.mxu0 0.0
        %1192 = vmatpush1.msra.mxu0 0.0
        %1193 = vmatprep.subr.mxu0 0.0
        %1194 = vmatpush1.msra.mxu0 0.0
        %1195 = vmatprep.subr.mxu0 0.0
        %1196 = vmatpush1.msra.mxu0 0.0
        %1197 = vmatprep.subr.mxu0 0.0
        %1198 = vmatpush1.msra.mxu0 0.0
        %1199 = vmatprep.subr.mxu0 0.0
        %1200 = vmatpush1.msra.mxu0 0.0
        %1201 = vmatprep.subr.mxu0 0.0
        %1202 = vmatpush1.msra.mxu0 0.0
        %1203 = vmatprep.subr.mxu0 0.0
        %1204 = vmatpush1.msra.mxu0 0.0
        %1205 = vmatprep.subr.mxu0 0.0
        %1206 = vmatpush1.msra.mxu0 0.0
        %1207 = vmatprep.subr.mxu0 0.0
        %1208 = vmatpush1.msra.mxu0 0.0
        %1209 = vmatprep.subr.mxu0 0.0
        %1210 = vmatpush1.msra.mxu0 0.0
        %1211 = vmatprep.subr.mxu0 0.0
        %1212 = vmatpush1.msra.mxu0 0.0
        %1213 = vmatprep.subr.mxu0 0.0
        %1214 = vmatpush1.msra.mxu0 0.0
        %1215 = vmatprep.subr.mxu0 0.0
        %1216 = vmatpush1.msra.mxu0 0.0
        %1217 = vmatprep.subr.mxu0 0.0
        %1218 = vmatpush1.msra.mxu0 %v1182
        %1219 = vmatprep.subr.mxu0 0.0
        %1220 = vmatpush2.msra.mxu0 0.0
        %1221 = vmatprep.subr.mxu0 0.0
        %1222 = vmatpush2.msra.mxu0 0.0
        %1223 = vmatprep.subr.mxu0 0.0
        %1224 = vmatpush2.msra.mxu0 0.0
        %1225 = vmatprep.subr.mxu0 0.0
        %1226 = vmatpush2.msra.mxu0 0.0
        %1227 = vmatprep.subr.mxu0 0.0
        %1228 = vmatpush2.msra.mxu0 0.0
        %1229 = vmatprep.subr.mxu0 0.0
        %1230 = vmatpush2.msra.mxu0 0.0
        %1231 = vmatprep.subr.mxu0 0.0
        %1232 = vmatpush2.msra.mxu0 0.0
        %1233 = vmatprep.subr.mxu0 0.0
        %1234 = vmatpush2.msra.mxu0 0.0
        %1235 = vmatprep.subr.mxu0 0.0
        %1236 = vmatpush2.msra.mxu0 0.0
        %1237 = vmatprep.subr.mxu0 0.0
        %1238 = vmatpush2.msra.mxu0 0.0
        %1239 = vmatprep.subr.mxu0 0.0
        %1240 = vmatpush2.msra.mxu0 0.0
        %1241 = vmatprep.subr.mxu0 0.0
        %1242 = vmatpush2.msra.mxu0 0.0
        %1243 = vmatprep.subr.mxu0 0.0
        %1244 = vmatpush2.msra.mxu0 0.0
        %1245 = vmatprep.subr.mxu0 0.0
        %1246 = vmatpush2.msra.mxu0 0.0
        %1247 = vmatprep.subr.mxu0 0.0
        %1248 = vmatpush2.msra.mxu0 0.0
        %1249 = vmatprep.subr.mxu0 0.0
        %1250 = vmatpush2.msra.mxu0 0.0
        %1251 = vmatprep.mubr.f32.mxu0 0.0
        %1252 = vmatmul.mubr.f32.gmra.mxu0 %v1185
        %v1253 = vpop.f32.mrf.mxu0
        %v1254 = vadd.f32 0.0, %v1253
        %v1255 = vpop.f32.mrf.mxu0
        %1256 = vdwg.mxu0
        %v1257 = vadd.f32 %v1180, %v1254
        %1258 = vst.msk [vmem:[%s1173] sm:$0xff] %vm691, %v1257
        %1259 = vst.msk [vmem:[%s1148] sm:$0xff] %vm790, %v1153
        %s1260 = scalar_lea.vmem [#allocation2], 24
        %v1261 = vld [vmem:[%s1260] sm:$0xff]
        %1262 = vrot.lane.b32.xlu0 %v687, 104
        %v1263 = vpop.permute.xlu0 %1262
        %v1265 = vsel %vm691, %v1261, 0
        %v1267 = vsel %vm691, %v1263, 0
        %1269 = vmatprep.subr.mxu0 0.0
        %1270 = vmatpush1.xpose.msra.mxu0 0.0
        %1271 = vmatprep.subr.mxu0 0.0
        %1272 = vmatpush1.xpose.msra.mxu0 0.0
        %1273 = vmatprep.subr.mxu0 0.0
        %1274 = vmatpush1.xpose.msra.mxu0 0.0
        %1275 = vmatprep.subr.mxu0 0.0
        %1276 = vmatpush1.xpose.msra.mxu0 0.0
        %1277 = vmatprep.subr.mxu0 0.0
        %1278 = vmatpush1.xpose.msra.mxu0 0.0
        %1279 = vmatprep.subr.mxu0 0.0
        %1280 = vmatpush1.xpose.msra.mxu0 0.0
        %1281 = vmatprep.subr.mxu0 0.0
        %1282 = vmatpush1.xpose.msra.mxu0 0.0
        %1283 = vmatprep.subr.mxu0 0.0
        %1284 = vmatpush1.xpose.msra.mxu0 0.0
        %1285 = vmatprep.subr.mxu0 0.0
        %1286 = vmatpush1.xpose.msra.mxu0 0.0
        %1287 = vmatprep.subr.mxu0 0.0
        %1288 = vmatpush1.xpose.msra.mxu0 0.0
        %1289 = vmatprep.subr.mxu0 0.0
        %1290 = vmatpush1.xpose.msra.mxu0 0.0
        %1291 = vmatprep.subr.mxu0 0.0
        %1292 = vmatpush1.xpose.msra.mxu0 0.0
        %1293 = vmatprep.subr.mxu0 0.0
        %1294 = vmatpush1.xpose.msra.mxu0 0.0
        %1295 = vmatprep.subr.mxu0 0.0
        %1296 = vmatpush1.xpose.msra.mxu0 0.0
        %1297 = vmatprep.subr.mxu0 0.0
        %1298 = vmatpush1.xpose.msra.mxu0 0.0
        %1299 = vmatprep.subr.mxu0 0.0
        %1300 = vmatpush1.xpose.msra.mxu0 %v1267
        %1301 = vmatprep.subr.mxu0 0.0
        %1302 = vmatpush2.xpose.msra.mxu0 0.0
        %1303 = vmatprep.subr.mxu0 0.0
        %1304 = vmatpush2.xpose.msra.mxu0 0.0
        %1305 = vmatprep.subr.mxu0 0.0
        %1306 = vmatpush2.xpose.msra.mxu0 0.0
        %1307 = vmatprep.subr.mxu0 0.0
        %1308 = vmatpush2.xpose.msra.mxu0 0.0
        %1309 = vmatprep.subr.mxu0 0.0
        %1310 = vmatpush2.xpose.msra.mxu0 0.0
        %1311 = vmatprep.subr.mxu0 0.0
        %1312 = vmatpush2.xpose.msra.mxu0 0.0
        %1313 = vmatprep.subr.mxu0 0.0
        %1314 = vmatpush2.xpose.msra.mxu0 0.0
        %1315 = vmatprep.subr.mxu0 0.0
        %1316 = vmatpush2.xpose.msra.mxu0 0.0
        %1317 = vmatprep.subr.mxu0 0.0
        %1318 = vmatpush2.xpose.msra.mxu0 0.0
        %1319 = vmatprep.subr.mxu0 0.0
        %1320 = vmatpush2.xpose.msra.mxu0 0.0
        %1321 = vmatprep.subr.mxu0 0.0
        %1322 = vmatpush2.xpose.msra.mxu0 0.0
        %1323 = vmatprep.subr.mxu0 0.0
        %1324 = vmatpush2.xpose.msra.mxu0 0.0
        %1325 = vmatprep.subr.mxu0 0.0
        %1326 = vmatpush2.xpose.msra.mxu0 0.0
        %1327 = vmatprep.subr.mxu0 0.0
        %1328 = vmatpush2.xpose.msra.mxu0 0.0
        %1329 = vmatprep.subr.mxu0 0.0
        %1330 = vmatpush2.xpose.msra.mxu0 0.0
        %1331 = vmatprep.subr.mxu0 0.0
        %1332 = vmatpush2.xpose.msra.mxu0 0.0
        %1333 = vmatprep.mubr.f32.mxu0 0.0
        %1334 = vmatmul.mubr.f32.gmra.mxu0 %v1265
        %v1335 = vpop.f32.mrf.mxu0
        %v1336 = vadd.f32 0.0, %v1335
        %v1337 = vpop.f32.mrf.mxu0
        %1338 = vdwg.mxu0
        %s1339 = scalar_lea.vmem [#allocation3], 24
        %v1340 = vld [vmem:[%s1339] sm:$0xff]
        %v1341 = vsel %vm691, %v1336, -inf
        %1342 = vmax.xlane.f32.xlu0 %v1341
        %v1343 = vpop.xlane.xlu0 %1342
        %v1344 = vmax.f32 %v1340, %v1343
        %v1345 = vsub.f32 %v1340, %v1344
        %v1346 = vmul.f32 %v1345, 1.442695
        %v1347 = vpow.pop %v1346
        %1349 = vset.pattern.permute.xlu0 0
        %1350 = vperm.xlu0 %1349, %v1344
        %v1351 = vpop.permute.xlu0 %1350
        %v1353 = vsub.f32 %v1336, %v1351
        %v1354 = vmul.f32 %v1353, 1.442695
        %v1355 = vpow.pop %v1354
        %s1356 = scalar_lea.vmem [#allocation4], 24
        %v1357 = vld [vmem:[%s1356] sm:$0xff]
        %v1358 = vmul.f32 %v1347, %v1357
        %v1359 = vsel %vm691, %v1355, 0.0
        %1360 = vadd.xlane.f32.xlu0 %v1359
        %v1361 = vpop.xlane.xlu0 %1360
        %v1362 = vadd.f32 %v1358, %v1361
        %1363 = vst.msk [vmem:[%s1356] sm:$0xff] %vm790, %v1362
        %s1364 = scalar_lea.vmem [#allocation5], 24
        %v1365 = vld [vmem:[%s1364] sm:$0xff]
        %1367 = vset.pattern.permute.xlu0 0
        %1368 = vperm.xlu0 %1367, %v1347
        %v1369 = vpop.permute.xlu0 %1368
        %v1371 = vmul.f32 %v1369, %v1365
        %1372 = vrot.lane.b32.xlu0 %v687, 72
        %v1373 = vpop.permute.xlu0 %1372
        %v1376 = vsel %vm691, %v1355, 0
        %1378 = vmatprep.subr.mxu0 0.0
        %1379 = vmatpush1.msra.mxu0 0.0
        %1380 = vmatprep.subr.mxu0 0.0
        %1381 = vmatpush1.msra.mxu0 0.0
        %1382 = vmatprep.subr.mxu0 0.0
        %1383 = vmatpush1.msra.mxu0 0.0
        %1384 = vmatprep.subr.mxu0 0.0
        %1385 = vmatpush1.msra.mxu0 0.0
        %1386 = vmatprep.subr.mxu0 0.0
        %1387 = vmatpush1.msra.mxu0 0.0
        %1388 = vmatprep.subr.mxu0 0.0
        %1389 = vmatpush1.msra.mxu0 0.0
        %1390 = vmatprep.subr.mxu0 0.0
        %1391 = vmatpush1.msra.mxu0 0.0
        %1392 = vmatprep.subr.mxu0 0.0
        %1393 = vmatpush1.msra.mxu0 0.0
        %1394 = vmatprep.subr.mxu0 0.0
        %1395 = vmatpush1.msra.mxu0 0.0
        %1396 = vmatprep.subr.mxu0 0.0
        %1397 = vmatpush1.msra.mxu0 0.0
        %1398 = vmatprep.subr.mxu0 0.0
        %1399 = vmatpush1.msra.mxu0 0.0
        %1400 = vmatprep.subr.mxu0 0.0
        %1401 = vmatpush1.msra.mxu0 0.0
        %1402 = vmatprep.subr.mxu0 0.0
        %1403 = vmatpush1.msra.mxu0 0.0
        %1404 = vmatprep.subr.mxu0 0.0
        %1405 = vmatpush1.msra.mxu0 0.0
        %1406 = vmatprep.subr.mxu0 0.0
        %1407 = vmatpush1.msra.mxu0 0.0
        %1408 = vmatprep.subr.mxu0 0.0
        %1409 = vmatpush1.msra.mxu0 %v1373
        %1410 = vmatprep.subr.mxu0 0.0
        %1411 = vmatpush2.msra.mxu0 0.0
        %1412 = vmatprep.subr.mxu0 0.0
        %1413 = vmatpush2.msra.mxu0 0.0
        %1414 = vmatprep.subr.mxu0 0.0
        %1415 = vmatpush2.msra.mxu0 0.0
        %1416 = vmatprep.subr.mxu0 0.0
        %1417 = vmatpush2.msra.mxu0 0.0
        %1418 = vmatprep.subr.mxu0 0.0
        %1419 = vmatpush2.msra.mxu0 0.0
        %1420 = vmatprep.subr.mxu0 0.0
        %1421 = vmatpush2.msra.mxu0 0.0
        %1422 = vmatprep.subr.mxu0 0.0
        %1423 = vmatpush2.msra.mxu0 0.0
        %1424 = vmatprep.subr.mxu0 0.0
        %1425 = vmatpush2.msra.mxu0 0.0
        %1426 = vmatprep.subr.mxu0 0.0
        %1427 = vmatpush2.msra.mxu0 0.0
        %1428 = vmatprep.subr.mxu0 0.0
        %1429 = vmatpush2.msra.mxu0 0.0
        %1430 = vmatprep.subr.mxu0 0.0
        %1431 = vmatpush2.msra.mxu0 0.0
        %1432 = vmatprep.subr.mxu0 0.0
        %1433 = vmatpush2.msra.mxu0 0.0
        %1434 = vmatprep.subr.mxu0 0.0
        %1435 = vmatpush2.msra.mxu0 0.0
        %1436 = vmatprep.subr.mxu0 0.0
        %1437 = vmatpush2.msra.mxu0 0.0
        %1438 = vmatprep.subr.mxu0 0.0
        %1439 = vmatpush2.msra.mxu0 0.0
        %1440 = vmatprep.subr.mxu0 0.0
        %1441 = vmatpush2.msra.mxu0 0.0
        %1442 = vmatprep.mubr.f32.mxu0 0.0
        %1443 = vmatmul.mubr.f32.gmra.mxu0 %v1376
        %v1444 = vpop.f32.mrf.mxu0
        %v1445 = vadd.f32 0.0, %v1444
        %v1446 = vpop.f32.mrf.mxu0
        %1447 = vdwg.mxu0
        %v1448 = vadd.f32 %v1371, %v1445
        %1449 = vst.msk [vmem:[%s1364] sm:$0xff] %vm691, %v1448
        %1450 = vst.msk [vmem:[%s1339] sm:$0xff] %vm790, %v1344
        // Predicated region
        $region85: #{tpu_custom_call.1} parent=59 // pred_check
          %p1451 = pneg %p482
        $region86: #{tpu_custom_call.1} parent=59 // pred_check_branch
          %1453 = sbr.rel (%p1451) target = $region88
        $region87: #{tpu_custom_call.1} parent=59 // pred_region
          %v1454 = vld [vmem:[#allocation4] sm:$0xff]
          %v1455 = vrcp.pop %v1454
          %v1456 = vmul.f32 1.0, %v1455
          %v1457 = vld [vmem:[#allocation5] sm:$0xff]
          %1459 = vset.pattern.permute.xlu0 0
          %1460 = vperm.xlu0 %1459, %v1456
          %v1461 = vpop.permute.xlu0 %1460
          %v1463 = vmul.f32 %v1457, %v1461
          %1464 = vst.msk [vmem:[#allocation6] sm:$0xff] %vm691, %v1463
          %v1465 = vld [vmem:[%s974] sm:$0xff]
          %v1466 = vrcp.pop %v1465
          %v1467 = vmul.f32 1.0, %v1466
          %v1468 = vld [vmem:[%s982] sm:$0xff]
          %1470 = vset.pattern.permute.xlu0 0
          %1471 = vperm.xlu0 %1470, %v1467
          %v1472 = vpop.permute.xlu0 %1471
          %v1474 = vmul.f32 %v1468, %v1472
          %1476 = vrot.lane.b32.xlu0 %v1474, 8
          %v1477 = vpop.permute.xlu0 %1476
          %vm1479 = vcmask 130112
          %1480 = vst.msk [vmem:[#allocation6] sm:$0xff] %vm1479, %v1477
          %v1481 = vld [vmem:[%s1165] sm:$0xff]
          %v1482 = vrcp.pop %v1481
          %v1483 = vmul.f32 1.0, %v1482
          %v1484 = vld [vmem:[%s1173] sm:$0xff]
          %1486 = vset.pattern.permute.xlu0 0
          %1487 = vperm.xlu0 %1486, %v1483
          %v1488 = vpop.permute.xlu0 %1487
          %v1490 = vmul.f32 %v1484, %v1488
          %1492 = vrot.lane.b32.xlu0 %v1490, 16
          %v1493 = vpop.permute.xlu0 %1492
          %vm1495 = vcmask 195712
          %1496 = vst.msk [vmem:[#allocation6] sm:$0xff] %vm1495, %v1493
          %v1497 = vld [vmem:[%s1356] sm:$0xff]
          %v1498 = vrcp.pop %v1497
          %v1499 = vmul.f32 1.0, %v1498
          %v1500 = vld [vmem:[%s1364] sm:$0xff]
          %1502 = vset.pattern.permute.xlu0 0
          %1503 = vperm.xlu0 %1502, %v1499
          %v1504 = vpop.permute.xlu0 %1503
          %v1506 = vmul.f32 %v1500, %v1504
          %1508 = vrot.lane.b32.xlu0 %v1506, 24
          %v1509 = vpop.permute.xlu0 %1508
          %vm1511 = vcmask 261312
          %1512 = vst.msk [vmem:[#allocation6] sm:$0xff] %vm1511, %v1509
          %v1513 = vld [vmem:[#allocation6] sm:$0xff]
          %v1514 = vld [vmem:[#allocation15] sm:$0xff]
          %v1515 = vld [vmem:[#allocation15 + $0x8] sm:$0xff]
          %v1516 = vld [vmem:[#allocation15 + $0x10] sm:$0xff]
          %v1517 = vld [vmem:[#allocation15 + $0x18] sm:$0xff]
          %v1518 = vld [vmem:[%s7] sm:$0x1]
          %v1520 = vlaneseq
          %v1521 = vshrl.u32 %v1520, 7
          %v1522 = vsub.s32 0, %v1521
          %v1523 = vrot.slane %v1518, %v1522
          %v1526 = vsel %vm616, %v1513, 0
          %1528 = vmatprep.subr.mxu0 0.0
          %1529 = vmatpush1.msra.mxu0 0.0
          %1530 = vmatprep.subr.mxu0 0.0
          %1531 = vmatpush1.msra.mxu0 0.0
          %1532 = vmatprep.subr.mxu0 0.0
          %1533 = vmatpush1.msra.mxu0 0.0
          %1534 = vmatprep.subr.mxu0 0.0
          %1535 = vmatpush1.msra.mxu0 0.0
          %1536 = vmatprep.subr.mxu0 0.0
          %1537 = vmatpush1.msra.mxu0 0.0
          %1538 = vmatprep.subr.mxu0 0.0
          %1539 = vmatpush1.msra.mxu0 0.0
          %1540 = vmatprep.subr.mxu0 0.0
          %1541 = vmatpush1.msra.mxu0 0.0
          %1542 = vmatprep.subr.mxu0 0.0
          %1543 = vmatpush1.msra.mxu0 0.0
          %1544 = vmatprep.subr.mxu0 0.0
          %1545 = vmatpush1.msra.mxu0 0.0
          %1546 = vmatprep.subr.mxu0 0.0
          %1547 = vmatpush1.msra.mxu0 0.0
          %1548 = vmatprep.subr.mxu0 0.0
          %1549 = vmatpush1.msra.mxu0 0.0
          %1550 = vmatprep.subr.mxu0 0.0
          %1551 = vmatpush1.msra.mxu0 0.0
          %1552 = vmatprep.subr.mxu0 0.0
          %1553 = vmatpush1.msra.mxu0 %v1517
          %1554 = vmatprep.subr.mxu0 0.0
          %1555 = vmatpush1.msra.mxu0 %v1516
          %1556 = vmatprep.subr.mxu0 0.0
          %1557 = vmatpush1.msra.mxu0 %v1515
          %1558 = vmatprep.subr.mxu0 0.0
          %1559 = vmatpush1.msra.mxu0 %v1514
          %1560 = vmatprep.subr.mxu0 0.0
          %1561 = vmatpush2.msra.mxu0 0.0
          %1562 = vmatprep.subr.mxu0 0.0
          %1563 = vmatpush2.msra.mxu0 0.0
          %1564 = vmatprep.subr.mxu0 0.0
          %1565 = vmatpush2.msra.mxu0 0.0
          %1566 = vmatprep.subr.mxu0 0.0
          %1567 = vmatpush2.msra.mxu0 0.0
          %1568 = vmatprep.subr.mxu0 0.0
          %1569 = vmatpush2.msra.mxu0 0.0
          %1570 = vmatprep.subr.mxu0 0.0
          %1571 = vmatpush2.msra.mxu0 0.0
          %1572 = vmatprep.subr.mxu0 0.0
          %1573 = vmatpush2.msra.mxu0 0.0
          %1574 = vmatprep.subr.mxu0 0.0
          %1575 = vmatpush2.msra.mxu0 0.0
          %1576 = vmatprep.subr.mxu0 0.0
          %1577 = vmatpush2.msra.mxu0 0.0
          %1578 = vmatprep.subr.mxu0 0.0
          %1579 = vmatpush2.msra.mxu0 0.0
          %1580 = vmatprep.subr.mxu0 0.0
          %1581 = vmatpush2.msra.mxu0 0.0
          %1582 = vmatprep.subr.mxu0 0.0
          %1583 = vmatpush2.msra.mxu0 0.0
          %1584 = vmatprep.subr.mxu0 0.0
          %1585 = vmatpush2.msra.mxu0 0.0
          %1586 = vmatprep.subr.mxu0 0.0
          %1587 = vmatpush2.msra.mxu0 0.0
          %1588 = vmatprep.subr.mxu0 0.0
          %1589 = vmatpush2.msra.mxu0 0.0
          %1590 = vmatprep.subr.mxu0 0.0
          %1591 = vmatpush2.msra.mxu0 0.0
          %1592 = vmatprep.mubr.f32.mxu0 0.0
          %1593 = vmatmul.mubr.f32.gmra.mxu0 %v1526
          %v1594 = vpop.f32.mrf.mxu0
          %v1595 = vadd.f32 %v1523, %v1594
          %v1596 = vpop.f32.mrf.mxu0
          %1597 = vdwg.mxu0
          %v1598 = vld [vmem:[%s419] sm:$0xff]
          %v1599 = vadd.f32 %v1598, %v1595
          %v1600 = vsel %vm616, %v1599, 0.0
          %1601 = vadd.xlane.f32.xlu0 %v1600
          %v1602 = vpop.xlane.xlu0 %1601
          %v1603 = vrcp.pop 32.0
          %v1604 = vmul.f32 %v1602, %v1603
          %v1605 = vsub.f32 %v1599, %v1604
          %v1606 = vmul.f32 %v1605, %v1605
          %v1607 = vsel %vm616, %v1606, 0.0
          %1608 = vadd.xlane.f32.xlu0 %v1607
          %v1609 = vpop.xlane.xlu0 %1608
          %v1610 = vmul.f32 %v1609, %v1603
          %v1611 = vadd.f32 %v1610, 1e-05
          %v1612 = vrsqrt.pop %v1611
          %v1613 = vmul.f32 %v1605, %v1612
          %v1614 = vld [vmem:[%s8] sm:$0x1]
          %v1616 = vlaneseq
          %v1617 = vshrl.u32 %v1616, 7
          %v1618 = vsub.s32 0, %v1617
          %v1619 = vrot.slane %v1614, %v1618
          %v1621 = vmul.f32 %v1613, %v1619
          %v1622 = vld [vmem:[%s9] sm:$0x1]
          %v1624 = vlaneseq
          %v1625 = vshrl.u32 %v1624, 7
          %v1626 = vsub.s32 0, %v1625
          %v1627 = vrot.slane %v1622, %v1626
          %v1629 = vadd.f32 %v1621, %v1627
          %1630 = vst.msk [vmem:[%s481] sm:$0xff] %vm616, %v1629
        $region88: #{tpu_custom_call.1} parent=59 // pred_fallthru
          _
        %s1631 = sand.u32 %s284, 1
        %s1632 = scalar_lea.sflag [#allocation9], %s1631
        %s1633 = sand.u32 %s284, 1
        %s1634 = smul.addr %s1633, 8
        %s1635 = scalar_lea.vmem [#allocation16], %s1634
        // Predicated region
        $region89: #{tpu_custom_call.1} parent=59 // pred_check
          %p1636 = pneg %p294
        $region90: #{tpu_custom_call.1} parent=59 // pred_check_branch
          %1638 = sbr.rel (%p1636) target = $region92
        $region91: #{tpu_custom_call.1} parent=59 // pred_region
          %s1640 = ssub.s32 128, 128
          %1641 = vsyncadd %s1632, %s1640
          %s1642 = sadd.s32 %s37, %s36
          %s1643 = smul.addr %s1642, 128
          %s1644 = scalar_lea.hbm %s10, %s1643
          %s1646 = sshll.u32 %s1635, 4
          %s1647 = int_to_ptr.vmem [resolvable:$true] %s1646
          %1649 = dma.vmem_to_hbm [thread:$0]  %s1647, 128, %s1644, %s1632
        $region92: #{tpu_custom_call.1} parent=59 // pred_fallthru
          _
      $region60: #{tpu_custom_call.1} parent=5 // pred_fallthru
        _
      %p1650 = scmp.le.s32.totalorder 2, %s26
      // Predicated region
      $region93: #{tpu_custom_call.1} parent=5 // pred_check
        %p1651 = pneg %p1650
      $region94: #{tpu_custom_call.1} parent=5 // pred_check_branch
        %1653 = sbr.rel (%p1651) target = $region96
      $region95: #{tpu_custom_call.1} parent=5 // pred_region
        %s1654 = ssub.s32 %s26, 2
        // Predicated region
        $region97: #{tpu_custom_call.1} parent=95 // pred_check
          %p1655 = pneg %p300
        $region98: #{tpu_custom_call.1} parent=95 // pred_check_branch
          %1657 = sbr.rel (%p1655) target = $region100
        $region99: #{tpu_custom_call.1} parent=95 // pred_region
          %s1658 = sand.u32 %s285, 1
          %s1659 = scalar_lea.sflag [#allocation9], %s1658
          %s1660 = sand.u32 %s285, 1
          %s1661 = smul.addr %s1660, 8
          %s1662 = scalar_lea.vmem [#allocation16], %s1661
          %1663 = dma.done %s1659, 128
        $region100: #{tpu_custom_call.1} parent=95 // pred_fallthru
          _
      $region96: #{tpu_custom_call.1} parent=5 // pred_fallthru
        _
    $region6: #{tpu_custom_call.1} parent=1 // loop_footer
      %s30 = sadd.s32 1, %s26
    $region7: #{tpu_custom_call.1} parent=1 // loop_footer_branch
      %25 = sbr.rel target = $region3
    $region8: #{tpu_custom_call.1} parent=1 // loop_exit
      _
    %1664 = vsyncpa [#allocation8], 1
    %s1665 = scalar_lea.sflag [#allocation8], 1
    %1666 = vsyncpa %s1665, 1
    %1667 = vsyncpa [#allocation11], 1
    %s1668 = scalar_lea.sflag [#allocation11], 1
    %1669 = vsyncpa %s1668, 1
    %1670 = vsyncpa [#allocation14], 1
    %1671 = vsyncpa [#allocation9], 1
    %s1672 = scalar_lea.sflag [#allocation9], 1
    %1673 = vsyncpa %s1672, 1

</llo_original>
